<compile_context>
chip_gen: v7x
topology: tpu7x:2x2x1
jax: 0.10.0
libtpu: 0.0.40
codegen_flags: <defaults>
</compile_context>

<pallas_src>
import math

import jax
import jax.numpy as jnp
from jax import lax
from jax.experimental import pallas as pl
from jax.experimental.pallas import tpu as pltpu


def _round_up(a: int, b: int) -> int:
    return (a + b - 1) // b * b


def _vmem_limit_bytes() -> int:
    """Generation-aware scoped-VMEM target (~70% of physical, <=100 MiB)."""
    cap = None
    try:
        info = pltpu.get_tpu_info()
        for attr in ("vmem_capacity_bytes", "vmem_bytes", "vmem_size_bytes"):
            cap = getattr(info, attr, None)
            if cap:
                break
    except Exception:
        cap = None
    if not cap:
        cap = 64 * 1024 * 1024  # conservative fallback: v7x physical VMEM
    return int(min(int(cap) * 7 // 10, 100 * 1024 * 1024))


def _gaussian_emission_kernel(x_ref, shift_ref, wsq_ref, wlin_ref, bias_ref,
                              o_ref):
    """One M-tile of observations against all N states.

    x_ref    : [tm, K]  observation tile (native dtype)
    shift_ref: [1, K]   per-feature centering offset (f32)
    wsq_ref  : [K, N]   (-0.5 / cov)^T
    wlin_ref : [K, N]   (means_c / cov)^T
    bias_ref : [1, N]   -0.5*(sum_k means_c^2/cov + sum_k log cov + K*log 2pi)
    o_ref    : [tm, N]  log posterior tile
    """
    xc = x_ref[...].astype(jnp.float32) - shift_ref[...]        # [tm, K]
    acc = jnp.dot(xc * xc, wsq_ref[...],
                  preferred_element_type=jnp.float32,
                  precision=lax.Precision.HIGHEST)
    acc = acc + jnp.dot(xc, wlin_ref[...],
                        preferred_element_type=jnp.float32,
                        precision=lax.Precision.HIGHEST)
    o_ref[...] = (acc + bias_ref[...]).astype(o_ref.dtype)


def gaussian_emissions_forward(x, means, cov, *, tile_m=None,
                               out_dtype=jnp.float32):
    """Pallas forward pass of GaussianEmissions.

    x     : [..., K] observations (any float dtype; cast in-kernel)
    means : [N, K]   state means
    cov   : [N, K]   diagonal covariances (positive)
    returns [..., N] log posterior, dtype `out_dtype`
    """
    n_states, k_feat = means.shape
    lead_shape = x.shape[:-1]
    m_total = 1
    for s in lead_shape:
        m_total *= s
    # Metadata-only reshape; keep native dtype (no extra HBM pass).
    x2d = x.reshape(m_total, k_feat)

    # ---- parameter-side precompute (tiny [N,K] arrays, plain JAX) ----------
    means = means.astype(jnp.float32)
    cov = cov.astype(jnp.float32)
    shift = jnp.mean(means, axis=0, keepdims=True)              # [1, K]
    means_c = means - shift                                     # centered
    inv_cov = 1.0 / cov
    w_sq = (-0.5 * inv_cov).T                                   # [K, N]
    w_lin = (inv_cov * means_c).T                               # [K, N]
    bias = -0.5 * (jnp.sum(inv_cov * means_c * means_c, axis=1)
                   + jnp.sum(jnp.log(cov), axis=1)
                   + k_feat * math.log(2.0 * math.pi))          # [N]
    bias = bias.reshape(1, n_states)

    # ---- VMEM budget & tile selection ---------------------------------------
    vmem_limit = _vmem_limit_bytes()
    x_itemsize = jnp.dtype(x.dtype).itemsize
    out_itemsize = jnp.dtype(out_dtype).itemsize
    lane_k = _round_up(k_feat, 128)          # lane padding of x / shift tiles
    lane_n = _round_up(n_states, 128)        # lane padding of W / bias / out

    # Grid-invariant footprint (double-buffered, conservative): Wsq+Wlin,
    # bias, shift.
    fixed_bytes = 2 * (2 * _round_up(k_feat, 8) * lane_n * 4
                       + 8 * lane_n * 4
                       + 8 * lane_k * 4)
    headroom = 4 * 1024 * 1024
    budget = max(vmem_limit - fixed_bytes - headroom, 2 * 1024 * 1024)

    # Per-row bytes: double-buffered x + out tiles, plus f32 temporaries for
    # the dot result (pre-cast) and centered/squared x.
    per_row = (2 * lane_k * x_itemsize + 2 * lane_n * out_itemsize
               + lane_n * 4 + 2 * lane_k * 4)

    if tile_m is None:
        tile_m = 2048                         # big tiles amortize step overhead
    tile_m = max(8, _round_up(int(tile_m), 8))
    max_tile = max(8, (budget // per_row) // 8 * 8)
    tile_m = min(tile_m, max_tile)
    tile_m = max(8, min(tile_m, _round_up(max(m_total, 1), 8)))

    # Ragged M: let Pallas mask the last block; no jnp.pad, no output slice.
    grid = (pl.cdiv(m_total, tile_m),)

    out2d = pl.pallas_call(
        _gaussian_emission_kernel,
        out_shape=jax.ShapeDtypeStruct((m_total, n_states), out_dtype),
        grid_spec=pltpu.PrefetchScalarGridSpec(
            num_scalar_prefetch=0,
            grid=grid,
            in_specs=[
                pl.BlockSpec((tile_m, k_feat), lambda i: (i, 0)),     # x tile
                pl.BlockSpec((1, k_feat), lambda i: (0, 0)),          # shift
                pl.BlockSpec((k_feat, n_states), lambda i: (0, 0)),   # Wsq
                pl.BlockSpec((k_feat, n_states), lambda i: (0, 0)),   # Wlin
                pl.BlockSpec((1, n_states), lambda i: (0, 0)),        # bias
            ],
            out_specs=pl.BlockSpec((tile_m, n_states), lambda i: (i, 0)),
        ),
        compiler_params=pltpu.CompilerParams(
            dimension_semantics=("parallel",),        # splits across TCs on v7x
            vmem_limit_bytes=vmem_limit,
        ),
    )(x2d, shift, w_sq, w_lin, bias)

    return out2d.reshape(*lead_shape, n_states)


def _reference_forward(x, means, cov):
    """Pure-JAX replica of the PyTorch forward (for verification)."""
    k_feat = means.shape[1]
    diff = means - x[..., None, :].astype(jnp.float32)          # [..., N, K]
    quad = jnp.sum((1.0 / cov) * diff * diff, axis=-1)
    return -0.5 * (quad + jnp.sum(jnp.log(cov), axis=1)
                   + k_feat * math.log(2.0 * math.pi))


if __name__ == "__main__":
    key = jax.random.PRNGKey(0)
    k_x, k_means, k_cov, k_x2, k_m2, k_c2 = jax.random.split(key, 6)

    # Case 1: aligned shapes  x [B, T, K], means/cov [N, K], N multiple of 128.
    B, T, K, N = 2, 64, 4, 128
    x = jax.random.normal(k_x, (B, T, K), dtype=jnp.float32)
    means = jax.random.normal(k_means, (N, K), dtype=jnp.float32)
    cov = 0.5 + jax.random.uniform(k_cov, (N, K), dtype=jnp.float32)

    out = gaussian_emissions_forward(x, means, cov)
    out = jax.block_until_ready(out)
    ref = _reference_forward(x, means, cov)
    assert out.shape == (B, T, N)
    assert jnp.allclose(out, ref, rtol=1e-4, atol=1e-4), "mismatch (case 1)"

    # Case 2: ragged M, non-multiple-of-128 N, bf16 observations.
    B2, T2, K2, N2 = 3, 50, 4, 40
    x2 = jax.random.normal(k_x2, (B2, T2, K2), dtype=jnp.float32)
    means2 = jax.random.normal(k_m2, (N2, K2), dtype=jnp.float32)
    cov2 = 0.5 + jax.random.uniform(k_c2, (N2, K2), dtype=jnp.float32)

    out2 = gaussian_emissions_forward(x2.astype(jnp.bfloat16), means2, cov2,
                                      tile_m=64)
    out2 = jax.block_until_ready(out2)
    ref2 = _reference_forward(x2.astype(jnp.bfloat16), means2, cov2)
    assert out2.shape == (B2, T2, N2)
    assert jnp.allclose(out2, ref2, rtol=2e-2, atol=2e-2), "mismatch (case 2)"

    print("KERNEL_OK")
</pallas_src>

<mosaic_0001>
module attributes {stable_mosaic.version = 11 : i64} {
  func.func @_gaussian_emission_kernel(%arg0: i32, %arg1: memref<128x4xf32, #tpu.memory_space<vmem>>, %arg2: memref<1x4xf32, #tpu.memory_space<vmem>>, %arg3: memref<4x128xf32, #tpu.memory_space<vmem>>, %arg4: memref<4x128xf32, #tpu.memory_space<vmem>>, %arg5: memref<1x128xf32, #tpu.memory_space<vmem>>, %arg6: memref<128x128xf32, #tpu.memory_space<vmem>>) attributes {dimension_semantics = [#tpu.dimension_semantics<parallel>], iteration_bounds = array<i64: 1>, scalar_prefetch = 0 : i64, scratch_operands = 0 : i64, tpu.core_type = #tpu.core_type<tc>, window_params = [{transform_indices = @transform_0, window_bounds = array<i64: 128, 4>}, {pipeline_mode = #tpu.pipeline_mode<synchronous>, transform_indices = @transform_1, window_bounds = array<i64: 1, 4>}, {pipeline_mode = #tpu.pipeline_mode<synchronous>, transform_indices = @transform_2, window_bounds = array<i64: 4, 128>}, {pipeline_mode = #tpu.pipeline_mode<synchronous>, transform_indices = @transform_3, window_bounds = array<i64: 4, 128>}, {pipeline_mode = #tpu.pipeline_mode<synchronous>, transform_indices = @transform_4, window_bounds = array<i64: 1, 128>}, {transform_indices = @transform_5, window_bounds = array<i64: 128, 128>}]} {
    %c0 = arith.constant 0 : index
    %c0_0 = arith.constant 0 : index
    %0 = vector.load %arg1[%c0, %c0_0] : memref<128x4xf32, #tpu.memory_space<vmem>>, vector<128x4xf32>
    %c0_1 = arith.constant 0 : index
    %c0_2 = arith.constant 0 : index
    %1 = vector.load %arg2[%c0_1, %c0_2] : memref<1x4xf32, #tpu.memory_space<vmem>>, vector<1x4xf32>
    %2 = vector.broadcast %1 : vector<1x4xf32> to vector<128x4xf32>
    %3 = arith.subf %0, %2 : vector<128x4xf32>
    %4 = arith.mulf %3, %3 : vector<128x4xf32>
    %c0_3 = arith.constant 0 : index
    %c0_4 = arith.constant 0 : index
    %5 = vector.load %arg3[%c0_3, %c0_4] : memref<4x128xf32, #tpu.memory_space<vmem>>, vector<4x128xf32>
    %cst = arith.constant dense<0.000000e+00> : vector<128x128xf32>
    %6 = tpu.matmul %4, %5, %cst {dimension_numbers = #tpu.dot_dimension_numbers<[1], [0], [0], [1], [0, 0, 1, 1], [], []>, precision = #tpu.contract_precision<fp32>} : vector<128x4xf32>, vector<4x128xf32>, vector<128x128xf32> -> vector<128x128xf32>
    %c0_5 = arith.constant 0 : index
    %c0_6 = arith.constant 0 : index
    %7 = vector.load %arg4[%c0_5, %c0_6] : memref<4x128xf32, #tpu.memory_space<vmem>>, vector<4x128xf32>
    %cst_7 = arith.constant dense<0.000000e+00> : vector<128x128xf32>
    %8 = tpu.matmul %3, %7, %cst_7 {dimension_numbers = #tpu.dot_dimension_numbers<[1], [0], [0], [1], [0, 0, 1, 1], [], []>, precision = #tpu.contract_precision<fp32>} : vector<128x4xf32>, vector<4x128xf32>, vector<128x128xf32> -> vector<128x128xf32>
    %9 = arith.addf %6, %8 : vector<128x128xf32>
    %c0_8 = arith.constant 0 : index
    %c0_9 = arith.constant 0 : index
    %10 = vector.load %arg5[%c0_8, %c0_9] : memref<1x128xf32, #tpu.memory_space<vmem>>, vector<1x128xf32>
    %11 = vector.broadcast %10 : vector<1x128xf32> to vector<128x128xf32>
    %12 = arith.addf %9, %11 : vector<128x128xf32>
    %c0_10 = arith.constant 0 : index
    %c0_11 = arith.constant 0 : index
    %13 = vector.load %arg6[%c0_10, %c0_11] : memref<128x128xf32, #tpu.memory_space<vmem>>, vector<128x128xf32>
    tpu.vector_store %arg6[%c0_10, %c0_11], %12 {strides = array<i32>} : memref<128x128xf32, #tpu.memory_space<vmem>>, vector<128x128xf32>,
    return
  }
  func.func @transform_0(%arg0: i32) -> (i32, i32) {
    %c0_i32 = arith.constant 0 : i32
    %c0_i32_0 = arith.constant 0 : i32
    return %arg0, %c0_i32 : i32, i32
  }
  func.func @transform_1(%arg0: i32) -> (i32, i32) {
    %c0_i32 = arith.constant 0 : i32
    %c0_i32_0 = arith.constant 0 : i32
    %c0_i32_1 = arith.constant 0 : i32
    return %c0_i32, %c0_i32_0 : i32, i32
  }
  func.func @transform_2(%arg0: i32) -> (i32, i32) {
    %c0_i32 = arith.constant 0 : i32
    %c0_i32_0 = arith.constant 0 : i32
    %c0_i32_1 = arith.constant 0 : i32
    return %c0_i32, %c0_i32_0 : i32, i32
  }
  func.func @transform_3(%arg0: i32) -> (i32, i32) {
    %c0_i32 = arith.constant 0 : i32
    %c0_i32_0 = arith.constant 0 : i32
    %c0_i32_1 = arith.constant 0 : i32
    return %c0_i32, %c0_i32_0 : i32, i32
  }
  func.func @transform_4(%arg0: i32) -> (i32, i32) {
    %c0_i32 = arith.constant 0 : i32
    %c0_i32_0 = arith.constant 0 : i32
    %c0_i32_1 = arith.constant 0 : i32
    return %c0_i32, %c0_i32_0 : i32, i32
  }
  func.func @transform_5(%arg0: i32) -> (i32, i32) {
    %c0_i32 = arith.constant 0 : i32
    %c0_i32_0 = arith.constant 0 : i32
    return %arg0, %c0_i32 : i32, i32
  }
}

</mosaic_0001>

<llo_original>
// kernel: tpu_custom_call.1
$region0: #{tpu_custom_call.1}
  #allocation0 [shape = 'u32[]', space=smem, size = 0x4, offset = 0x4, fixed_abs, tag = 'smem constant byte address 0x4 - core index']
  #allocation1 [shape = 'u32[144,128]{1,0:T(1,128)}', space=vmem, size = 0x12000, scoped, tag = 'internal scratch']
  %s0 = inlined_call_operand.vmem [shape: f32[128,4], index: 0, kind: input, shape index: {}]
  %s1 = inlined_call_operand.vmem [shape: f32[1,4], index: 1, kind: input, shape index: {}]
  %s2 = inlined_call_operand.vmem [shape: f32[4,128], index: 2, kind: input, shape index: {}]
  %s3 = inlined_call_operand.vmem [shape: f32[4,128], index: 3, kind: input, shape index: {}]
  %s4 = inlined_call_operand.vmem [shape: f32[1,128], index: 4, kind: input, shape index: {}]
  %s5 = inlined_call_operand.hbm [shape: f32[128,128], index: 5, kind: output, shape index: {}]
  %s6 = sld [smem:[#allocation0]]
  $region30: #{tpu_custom_call.1} parent=0
    _
  %s8 = ssub.s32 1, %s6
  %s9 = scalar_select 0, %s8, %s6
  $region1: #{tpu_custom_call.1} parent=0
    #allocation2 [shape = 'u8[65536]{0}', space=vmem, size = 0x10000, scoped, tag = 'output window, operand 0, single buffered']
    #allocation3 [shape = 's32[1]{0}', space=sflag, size = 0x4, scoped, tag = 'scoped memory for tpu_custom_call.1']
    %10 = vsyncpa [#allocation3], 0
    // Predicated region
    $region2: #{tpu_custom_call.1} parent=1 // pred_check
      _
    $region3: #{tpu_custom_call.1} parent=1 // pred_check_branch
      %12 = sbr.rel (0) target = $region5
    $region4: #{tpu_custom_call.1} parent=1 // pred_region
      _
    $region5: #{tpu_custom_call.1} parent=1 // pred_fallthru
      _
    // Predicated region
    $region6: #{tpu_custom_call.1} parent=1 // pred_check
      _
    $region7: #{tpu_custom_call.1} parent=1 // pred_check_branch
      %14 = sbr.rel (0) target = $region9
    $region8: #{tpu_custom_call.1} parent=1 // pred_region
      _
    $region9: #{tpu_custom_call.1} parent=1 // pred_fallthru
      _
    // Predicated region
    $region10: #{tpu_custom_call.1} parent=1 // pred_check
      _
    $region11: #{tpu_custom_call.1} parent=1 // pred_check_branch
      %16 = sbr.rel (0) target = $region13
    $region12: #{tpu_custom_call.1} parent=1 // pred_region
      _
    $region13: #{tpu_custom_call.1} parent=1 // pred_fallthru
      _
    // Predicated region
    $region14: #{tpu_custom_call.1} parent=1 // pred_check
      _
    $region15: #{tpu_custom_call.1} parent=1 // pred_check_branch
      %18 = sbr.rel (0) target = $region17
    $region16: #{tpu_custom_call.1} parent=1 // pred_region
      _
    $region17: #{tpu_custom_call.1} parent=1 // pred_fallthru
      _
    // Predicated region
    $region18: #{tpu_custom_call.1} parent=1 // pred_check
      _
    $region19: #{tpu_custom_call.1} parent=1 // pred_check_branch
      %20 = sbr.rel (0) target = $region21
    $region20: #{tpu_custom_call.1} parent=1 // pred_region
      _
    $region21: #{tpu_custom_call.1} parent=1 // pred_fallthru
      _
    %v21 = vld [vmem:[%s0] sm:$0xff]
    %v22 = vld [vmem:[%s0 + $0x8] sm:$0xff]
    %v23 = vld [vmem:[%s0 + $0x10] sm:$0xff]
    %v24 = vld [vmem:[%s0 + $0x18] sm:$0xff]
    %v25 = vld [vmem:[%s0 + $0x20] sm:$0xff]
    %v26 = vld [vmem:[%s0 + $0x28] sm:$0xff]
    %v27 = vld [vmem:[%s0 + $0x30] sm:$0xff]
    %v28 = vld [vmem:[%s0 + $0x38] sm:$0xff]
    %v29 = vld [vmem:[%s0 + $0x40] sm:$0xff]
    %v30 = vld [vmem:[%s0 + $0x48] sm:$0xff]
    %v31 = vld [vmem:[%s0 + $0x50] sm:$0xff]
    %v32 = vld [vmem:[%s0 + $0x58] sm:$0xff]
    %v33 = vld [vmem:[%s0 + $0x60] sm:$0xff]
    %v34 = vld [vmem:[%s0 + $0x68] sm:$0xff]
    %v35 = vld [vmem:[%s0 + $0x70] sm:$0xff]
    %v36 = vld [vmem:[%s0 + $0x78] sm:$0xff]
    %v37 = vld [vmem:[%s1] sm:$0x1]
    %v39 = vlaneseq
    %v40 = vshrl.u32 %v39, 7
    %v41 = vsub.s32 0, %v40
    %v42 = vrot.slane %v37, %v41
    %v44 = vsub.f32 %v21, %v42
    %v45 = vsub.f32 %v22, %v42
    %v46 = vsub.f32 %v23, %v42
    %v47 = vsub.f32 %v24, %v42
    %v48 = vsub.f32 %v25, %v42
    %v49 = vsub.f32 %v26, %v42
    %v50 = vsub.f32 %v27, %v42
    %v51 = vsub.f32 %v28, %v42
    %v52 = vsub.f32 %v29, %v42
    %v53 = vsub.f32 %v30, %v42
    %v54 = vsub.f32 %v31, %v42
    %v55 = vsub.f32 %v32, %v42
    %v56 = vsub.f32 %v33, %v42
    %v57 = vsub.f32 %v34, %v42
    %v58 = vsub.f32 %v35, %v42
    %v59 = vsub.f32 %v36, %v42
    %v60 = vmul.f32 %v44, %v44
    %v61 = vmul.f32 %v45, %v45
    %v62 = vmul.f32 %v46, %v46
    %v63 = vmul.f32 %v47, %v47
    %v64 = vmul.f32 %v48, %v48
    %v65 = vmul.f32 %v49, %v49
    %v66 = vmul.f32 %v50, %v50
    %v67 = vmul.f32 %v51, %v51
    %v68 = vmul.f32 %v52, %v52
    %v69 = vmul.f32 %v53, %v53
    %v70 = vmul.f32 %v54, %v54
    %v71 = vmul.f32 %v55, %v55
    %v72 = vmul.f32 %v56, %v56
    %v73 = vmul.f32 %v57, %v57
    %v74 = vmul.f32 %v58, %v58
    %v75 = vmul.f32 %v59, %v59
    %v76 = vld [vmem:[%s2] sm:$0xf]
    %v77 = vld [vmem:[%s3] sm:$0xf]
    %vm78 = vcmask 31744
    %v80 = vsel %vm78, %v44, 0
    %v83 = vsel %vm78, %v45, 0
    %v86 = vsel %vm78, %v46, 0
    %v89 = vsel %vm78, %v47, 0
    %v92 = vsel %vm78, %v48, 0
    %v95 = vsel %vm78, %v49, 0
    %v98 = vsel %vm78, %v50, 0
    %v101 = vsel %vm78, %v51, 0
    %v104 = vsel %vm78, %v52, 0
    %v107 = vsel %vm78, %v53, 0
    %v110 = vsel %vm78, %v54, 0
    %v113 = vsel %vm78, %v55, 0
    %v116 = vsel %vm78, %v56, 0
    %v119 = vsel %vm78, %v57, 0
    %v122 = vsel %vm78, %v58, 0
    %v125 = vsel %vm78, %v59, 0
    %vm127 = vcmask 1043456
    %v129 = vsel %vm127, %v77, 0
    %131 = vmatprep.subr.mxu0 0.0
    %v132 = vand.u32 %v129, 4294901760
    %133 = vmatpush1.msra.mxu0 %v132
    %134 = vmatprep.subr.mxu0 0.0
    %135 = vmatpush1.msra.mxu0 0.0
    %136 = vmatprep.subr.mxu0 0.0
    %137 = vmatpush1.msra.mxu0 0.0
    %138 = vmatprep.subr.mxu0 0.0
    %139 = vmatpush1.msra.mxu0 0.0
    %140 = vmatprep.subr.mxu0 0.0
    %141 = vmatpush1.msra.mxu0 0.0
    %142 = vmatprep.subr.mxu0 0.0
    %143 = vmatpush1.msra.mxu0 0.0
    %144 = vmatprep.subr.mxu0 0.0
    %145 = vmatpush1.msra.mxu0 0.0
    %146 = vmatprep.subr.mxu0 0.0
    %147 = vmatpush1.msra.mxu0 0.0
    %148 = vmatprep.subr.mxu0 0.0
    %149 = vmatpush1.msra.mxu0 0.0
    %150 = vmatprep.subr.mxu0 0.0
    %151 = vmatpush1.msra.mxu0 0.0
    %152 = vmatprep.subr.mxu0 0.0
    %153 = vmatpush1.msra.mxu0 0.0
    %154 = vmatprep.subr.mxu0 0.0
    %155 = vmatpush1.msra.mxu0 0.0
    %156 = vmatprep.subr.mxu0 0.0
    %157 = vmatpush1.msra.mxu0 0.0
    %158 = vmatprep.subr.mxu0 0.0
    %159 = vmatpush1.msra.mxu0 0.0
    %160 = vmatprep.subr.mxu0 0.0
    %161 = vmatpush1.msra.mxu0 0.0
    %162 = vmatprep.subr.mxu0 0.0
    %163 = vmatpush1.msra.mxu0 0.0
    %164 = vmatprep.subr.mxu0 0.0
    %165 = vmatpush1.msra.mxu0 0.0
    %166 = vmatprep.subr.mxu0 0.0
    %167 = vmatpush1.msra.mxu0 0.0
    %168 = vmatprep.subr.mxu0 0.0
    %169 = vmatpush1.msra.mxu0 0.0
    %170 = vmatprep.subr.mxu0 0.0
    %171 = vmatpush1.msra.mxu0 0.0
    %172 = vmatprep.subr.mxu0 0.0
    %173 = vmatpush1.msra.mxu0 0.0
    %174 = vmatprep.subr.mxu0 0.0
    %175 = vmatpush1.msra.mxu0 0.0
    %176 = vmatprep.subr.mxu0 0.0
    %177 = vmatpush1.msra.mxu0 0.0
    %178 = vmatprep.subr.mxu0 0.0
    %179 = vmatpush1.msra.mxu0 0.0
    %180 = vmatprep.subr.mxu0 0.0
    %181 = vmatpush1.msra.mxu0 0.0
    %182 = vmatprep.subr.mxu0 0.0
    %183 = vmatpush1.msra.mxu0 0.0
    %184 = vmatprep.subr.mxu0 0.0
    %185 = vmatpush1.msra.mxu0 0.0
    %186 = vmatprep.subr.mxu0 0.0
    %187 = vmatpush1.msra.mxu0 0.0
    %188 = vmatprep.subr.mxu0 0.0
    %189 = vmatpush1.msra.mxu0 0.0
    %190 = vmatprep.subr.mxu0 0.0
    %191 = vmatpush1.msra.mxu0 0.0
    %192 = vmatprep.subr.mxu0 0.0
    %193 = vmatpush1.msra.mxu0 0.0
    %194 = vmatprep.subr.mxu0 0.0
    %195 = vmatpush1.msra.mxu0 0.0
    %196 = vmatprep.mubr.f32.mxu0 0.0
    %v197 = vand.u32 %v80, 4294901760
    %v198 = vsub.f32 %v80, %v197
    %v199 = vand.u32 %v198, 4294901760
    %v200 = vsub.f32 %v198, %v199
    %v201 = vand.u32 %v200, 4294901760
    %202 = vmatmul.mubr.f32.gmra.mrb[0].mxu0 %v201
    %v203 = vpop.f32.mrb[0].mxu0
    %v204 = vadd.f32 0.0, %v203
    %v205 = vpop.f32.mrb[0].mxu0
    %206 = vmatprep.mubr.f32.mxu0 0.0
    %v207 = vand.u32 %v83, 4294901760
    %v208 = vsub.f32 %v83, %v207
    %v209 = vand.u32 %v208, 4294901760
    %v210 = vsub.f32 %v208, %v209
    %v211 = vand.u32 %v210, 4294901760
    %212 = vmatmul.mubr.f32.gmra.mrb[0].mxu0 %v211
    %v213 = vpop.f32.mrb[0].mxu0
    %v214 = vadd.f32 0.0, %v213
    %v215 = vpop.f32.mrb[0].mxu0
    %216 = vmatprep.mubr.f32.mxu0 0.0
    %v217 = vand.u32 %v86, 4294901760
    %v218 = vsub.f32 %v86, %v217
    %v219 = vand.u32 %v218, 4294901760
    %v220 = vsub.f32 %v218, %v219
    %v221 = vand.u32 %v220, 4294901760
    %222 = vmatmul.mubr.f32.gmra.mrb[0].mxu0 %v221
    %v223 = vpop.f32.mrb[0].mxu0
    %v224 = vadd.f32 0.0, %v223
    %v225 = vpop.f32.mrb[0].mxu0
    %226 = vmatprep.mubr.f32.mxu0 0.0
    %v227 = vand.u32 %v89, 4294901760
    %v228 = vsub.f32 %v89, %v227
    %v229 = vand.u32 %v228, 4294901760
    %v230 = vsub.f32 %v228, %v229
    %v231 = vand.u32 %v230, 4294901760
    %232 = vmatmul.mubr.f32.gmra.mrb[0].mxu0 %v231
    %v233 = vpop.f32.mrb[0].mxu0
    %v234 = vadd.f32 0.0, %v233
    %v235 = vpop.f32.mrb[0].mxu0
    %236 = vmatprep.mubr.f32.mxu0 0.0
    %v237 = vand.u32 %v92, 4294901760
    %v238 = vsub.f32 %v92, %v237
    %v239 = vand.u32 %v238, 4294901760
    %v240 = vsub.f32 %v238, %v239
    %v241 = vand.u32 %v240, 4294901760
    %242 = vmatmul.mubr.f32.gmra.mrb[0].mxu0 %v241
    %v243 = vpop.f32.mrb[0].mxu0
    %v244 = vadd.f32 0.0, %v243
    %v245 = vpop.f32.mrb[0].mxu0
    %246 = vmatprep.mubr.f32.mxu0 0.0
    %v247 = vand.u32 %v95, 4294901760
    %v248 = vsub.f32 %v95, %v247
    %v249 = vand.u32 %v248, 4294901760
    %v250 = vsub.f32 %v248, %v249
    %v251 = vand.u32 %v250, 4294901760
    %252 = vmatmul.mubr.f32.gmra.mrb[0].mxu0 %v251
    %v253 = vpop.f32.mrb[0].mxu0
    %v254 = vadd.f32 0.0, %v253
    %v255 = vpop.f32.mrb[0].mxu0
    %256 = vmatprep.mubr.f32.mxu0 0.0
    %v257 = vand.u32 %v98, 4294901760
    %v258 = vsub.f32 %v98, %v257
    %v259 = vand.u32 %v258, 4294901760
    %v260 = vsub.f32 %v258, %v259
    %v261 = vand.u32 %v260, 4294901760
    %262 = vmatmul.mubr.f32.gmra.mrb[0].mxu0 %v261
    %v263 = vpop.f32.mrb[0].mxu0
    %v264 = vadd.f32 0.0, %v263
    %v265 = vpop.f32.mrb[0].mxu0
    %266 = vmatprep.mubr.f32.mxu0 0.0
    %v267 = vand.u32 %v101, 4294901760
    %v268 = vsub.f32 %v101, %v267
    %v269 = vand.u32 %v268, 4294901760
    %v270 = vsub.f32 %v268, %v269
    %v271 = vand.u32 %v270, 4294901760
    %272 = vmatmul.mubr.f32.gmra.mrb[0].mxu0 %v271
    %v273 = vpop.f32.mrb[0].mxu0
    %v274 = vadd.f32 0.0, %v273
    %v275 = vpop.f32.mrb[0].mxu0
    %276 = vmatprep.mubr.f32.mxu0 0.0
    %v277 = vand.u32 %v104, 4294901760
    %v278 = vsub.f32 %v104, %v277
    %v279 = vand.u32 %v278, 4294901760
    %v280 = vsub.f32 %v278, %v279
    %v281 = vand.u32 %v280, 4294901760
    %282 = vmatmul.mubr.f32.gmra.mrb[0].mxu0 %v281
    %v283 = vpop.f32.mrb[0].mxu0
    %v284 = vadd.f32 0.0, %v283
    %v285 = vpop.f32.mrb[0].mxu0
    %286 = vmatprep.mubr.f32.mxu0 0.0
    %v287 = vand.u32 %v107, 4294901760
    %v288 = vsub.f32 %v107, %v287
    %v289 = vand.u32 %v288, 4294901760
    %v290 = vsub.f32 %v288, %v289
    %v291 = vand.u32 %v290, 4294901760
    %292 = vmatmul.mubr.f32.gmra.mrb[0].mxu0 %v291
    %v293 = vpop.f32.mrb[0].mxu0
    %v294 = vadd.f32 0.0, %v293
    %v295 = vpop.f32.mrb[0].mxu0
    %296 = vmatprep.mubr.f32.mxu0 0.0
    %v297 = vand.u32 %v110, 4294901760
    %v298 = vsub.f32 %v110, %v297
    %v299 = vand.u32 %v298, 4294901760
    %v300 = vsub.f32 %v298, %v299
    %v301 = vand.u32 %v300, 4294901760
    %302 = vmatmul.mubr.f32.gmra.mrb[0].mxu0 %v301
    %v303 = vpop.f32.mrb[0].mxu0
    %v304 = vadd.f32 0.0, %v303
    %v305 = vpop.f32.mrb[0].mxu0
    %306 = vmatprep.mubr.f32.mxu0 0.0
    %v307 = vand.u32 %v113, 4294901760
    %v308 = vsub.f32 %v113, %v307
    %v309 = vand.u32 %v308, 4294901760
    %v310 = vsub.f32 %v308, %v309
    %v311 = vand.u32 %v310, 4294901760
    %312 = vmatmul.mubr.f32.gmra.mrb[0].mxu0 %v311
    %v313 = vpop.f32.mrb[0].mxu0
    %v314 = vadd.f32 0.0, %v313
    %v315 = vpop.f32.mrb[0].mxu0
    %316 = vmatprep.mubr.f32.mxu0 0.0
    %v317 = vand.u32 %v116, 4294901760
    %v318 = vsub.f32 %v116, %v317
    %v319 = vand.u32 %v318, 4294901760
    %v320 = vsub.f32 %v318, %v319
    %v321 = vand.u32 %v320, 4294901760
    %322 = vmatmul.mubr.f32.gmra.mrb[0].mxu0 %v321
    %v323 = vpop.f32.mrb[0].mxu0
    %v324 = vadd.f32 0.0, %v323
    %v325 = vpop.f32.mrb[0].mxu0
    %326 = vmatprep.mubr.f32.mxu0 0.0
    %v327 = vand.u32 %v119, 4294901760
    %v328 = vsub.f32 %v119, %v327
    %v329 = vand.u32 %v328, 4294901760
    %v330 = vsub.f32 %v328, %v329
    %v331 = vand.u32 %v330, 4294901760
    %332 = vmatmul.mubr.f32.gmra.mrb[0].mxu0 %v331
    %v333 = vpop.f32.mrb[0].mxu0
    %v334 = vadd.f32 0.0, %v333
    %v335 = vpop.f32.mrb[0].mxu0
    %336 = vmatprep.mubr.f32.mxu0 0.0
    %v337 = vand.u32 %v122, 4294901760
    %v338 = vsub.f32 %v122, %v337
    %v339 = vand.u32 %v338, 4294901760
    %v340 = vsub.f32 %v338, %v339
    %v341 = vand.u32 %v340, 4294901760
    %342 = vmatmul.mubr.f32.gmra.mrb[0].mxu0 %v341
    %v343 = vpop.f32.mrb[0].mxu0
    %v344 = vadd.f32 0.0, %v343
    %v345 = vpop.f32.mrb[0].mxu0
    %346 = vmatprep.mubr.f32.mxu0 0.0
    %v347 = vand.u32 %v125, 4294901760
    %v348 = vsub.f32 %v125, %v347
    %v349 = vand.u32 %v348, 4294901760
    %v350 = vsub.f32 %v348, %v349
    %v351 = vand.u32 %v350, 4294901760
    %352 = vmatmul.mubr.f32.gmra.mrb[0].mxu0 %v351
    %v353 = vpop.f32.mrb[0].mxu0
    %v354 = vadd.f32 0.0, %v353
    %v355 = vpop.f32.mrb[0].mxu0
    %356 = vdwg.mxu0
    %357 = vmatprep.subr.mxu0 0.0
    %v358 = vand.u32 %v129, 4294901760
    %v359 = vsub.f32 %v129, %v358
    %v360 = vand.u32 %v359, 4294901760
    %v361 = vsub.f32 %v359, %v360
    %v362 = vand.u32 %v361, 4294901760
    %363 = vmatpush1.msra.mxu0 %v362
    %364 = vmatprep.subr.mxu0 0.0
    %365 = vmatpush1.msra.mxu0 0.0
    %366 = vmatprep.subr.mxu0 0.0
    %367 = vmatpush1.msra.mxu0 0.0
    %368 = vmatprep.subr.mxu0 0.0
    %369 = vmatpush1.msra.mxu0 0.0
    %370 = vmatprep.subr.mxu0 0.0
    %371 = vmatpush1.msra.mxu0 0.0
    %372 = vmatprep.subr.mxu0 0.0
    %373 = vmatpush1.msra.mxu0 0.0
    %374 = vmatprep.subr.mxu0 0.0
    %375 = vmatpush1.msra.mxu0 0.0
    %376 = vmatprep.subr.mxu0 0.0
    %377 = vmatpush1.msra.mxu0 0.0
    %378 = vmatprep.subr.mxu0 0.0
    %379 = vmatpush1.msra.mxu0 0.0
    %380 = vmatprep.subr.mxu0 0.0
    %381 = vmatpush1.msra.mxu0 0.0
    %382 = vmatprep.subr.mxu0 0.0
    %383 = vmatpush1.msra.mxu0 0.0
    %384 = vmatprep.subr.mxu0 0.0
    %385 = vmatpush1.msra.mxu0 0.0
    %386 = vmatprep.subr.mxu0 0.0
    %387 = vmatpush1.msra.mxu0 0.0
    %388 = vmatprep.subr.mxu0 0.0
    %389 = vmatpush1.msra.mxu0 0.0
    %390 = vmatprep.subr.mxu0 0.0
    %391 = vmatpush1.msra.mxu0 0.0
    %392 = vmatprep.subr.mxu0 0.0
    %393 = vmatpush1.msra.mxu0 0.0
    %394 = vmatprep.subr.mxu0 0.0
    %395 = vmatpush1.msra.mxu0 0.0
    %396 = vmatprep.subr.mxu0 0.0
    %397 = vmatpush1.msra.mxu0 0.0
    %398 = vmatprep.subr.mxu0 0.0
    %399 = vmatpush1.msra.mxu0 0.0
    %400 = vmatprep.subr.mxu0 0.0
    %401 = vmatpush1.msra.mxu0 0.0
    %402 = vmatprep.subr.mxu0 0.0
    %403 = vmatpush1.msra.mxu0 0.0
    %404 = vmatprep.subr.mxu0 0.0
    %405 = vmatpush1.msra.mxu0 0.0
    %406 = vmatprep.subr.mxu0 0.0
    %407 = vmatpush1.msra.mxu0 0.0
    %408 = vmatprep.subr.mxu0 0.0
    %409 = vmatpush1.msra.mxu0 0.0
    %410 = vmatprep.subr.mxu0 0.0
    %411 = vmatpush1.msra.mxu0 0.0
    %412 = vmatprep.subr.mxu0 0.0
    %413 = vmatpush1.msra.mxu0 0.0
    %414 = vmatprep.subr.mxu0 0.0
    %415 = vmatpush1.msra.mxu0 0.0
    %416 = vmatprep.subr.mxu0 0.0
    %417 = vmatpush1.msra.mxu0 0.0
    %418 = vmatprep.subr.mxu0 0.0
    %419 = vmatpush1.msra.mxu0 0.0
    %420 = vmatprep.subr.mxu0 0.0
    %421 = vmatpush1.msra.mxu0 0.0
    %422 = vmatprep.subr.mxu0 0.0
    %423 = vmatpush1.msra.mxu0 0.0
    %424 = vmatprep.subr.mxu0 0.0
    %425 = vmatpush1.msra.mxu0 0.0
    %426 = vmatprep.mubr.f32.mxu0 0.0
    %v427 = vand.u32 %v80, 4294901760
    %428 = vmatmul.mubr.f32.gmra.mrb[0].mxu0 %v427
    %v429 = vpop.f32.mrb[0].mxu0
    %v430 = vadd.f32 %v204, %v429
    %v431 = vpop.f32.mrb[0].mxu0
    %432 = vmatprep.mubr.f32.mxu0 0.0
    %v433 = vand.u32 %v83, 4294901760
    %434 = vmatmul.mubr.f32.gmra.mrb[0].mxu0 %v433
    %v435 = vpop.f32.mrb[0].mxu0
    %v436 = vadd.f32 %v214, %v435
    %v437 = vpop.f32.mrb[0].mxu0
    %438 = vmatprep.mubr.f32.mxu0 0.0
    %v439 = vand.u32 %v86, 4294901760
    %440 = vmatmul.mubr.f32.gmra.mrb[0].mxu0 %v439
    %v441 = vpop.f32.mrb[0].mxu0
    %v442 = vadd.f32 %v224, %v441
    %v443 = vpop.f32.mrb[0].mxu0
    %444 = vmatprep.mubr.f32.mxu0 0.0
    %v445 = vand.u32 %v89, 4294901760
    %446 = vmatmul.mubr.f32.gmra.mrb[0].mxu0 %v445
    %v447 = vpop.f32.mrb[0].mxu0
    %v448 = vadd.f32 %v234, %v447
    %v449 = vpop.f32.mrb[0].mxu0
    %450 = vmatprep.mubr.f32.mxu0 0.0
    %v451 = vand.u32 %v92, 4294901760
    %452 = vmatmul.mubr.f32.gmra.mrb[0].mxu0 %v451
    %v453 = vpop.f32.mrb[0].mxu0
    %v454 = vadd.f32 %v244, %v453
    %v455 = vpop.f32.mrb[0].mxu0
    %456 = vmatprep.mubr.f32.mxu0 0.0
    %v457 = vand.u32 %v95, 4294901760
    %458 = vmatmul.mubr.f32.gmra.mrb[0].mxu0 %v457
    %v459 = vpop.f32.mrb[0].mxu0
    %v460 = vadd.f32 %v254, %v459
    %v461 = vpop.f32.mrb[0].mxu0
    %462 = vmatprep.mubr.f32.mxu0 0.0
    %v463 = vand.u32 %v98, 4294901760
    %464 = vmatmul.mubr.f32.gmra.mrb[0].mxu0 %v463
    %v465 = vpop.f32.mrb[0].mxu0
    %v466 = vadd.f32 %v264, %v465
    %v467 = vpop.f32.mrb[0].mxu0
    %468 = vmatprep.mubr.f32.mxu0 0.0
    %v469 = vand.u32 %v101, 4294901760
    %470 = vmatmul.mubr.f32.gmra.mrb[0].mxu0 %v469
    %v471 = vpop.f32.mrb[0].mxu0
    %v472 = vadd.f32 %v274, %v471
    %v473 = vpop.f32.mrb[0].mxu0
    %474 = vmatprep.mubr.f32.mxu0 0.0
    %v475 = vand.u32 %v104, 4294901760
    %476 = vmatmul.mubr.f32.gmra.mrb[0].mxu0 %v475
    %v477 = vpop.f32.mrb[0].mxu0
    %v478 = vadd.f32 %v284, %v477
    %v479 = vpop.f32.mrb[0].mxu0
    %480 = vmatprep.mubr.f32.mxu0 0.0
    %v481 = vand.u32 %v107, 4294901760
    %482 = vmatmul.mubr.f32.gmra.mrb[0].mxu0 %v481
    %v483 = vpop.f32.mrb[0].mxu0
    %v484 = vadd.f32 %v294, %v483
    %v485 = vpop.f32.mrb[0].mxu0
    %486 = vmatprep.mubr.f32.mxu0 0.0
    %v487 = vand.u32 %v110, 4294901760
    %488 = vmatmul.mubr.f32.gmra.mrb[0].mxu0 %v487
    %v489 = vpop.f32.mrb[0].mxu0
    %v490 = vadd.f32 %v304, %v489
    %v491 = vpop.f32.mrb[0].mxu0
    %492 = vmatprep.mubr.f32.mxu0 0.0
    %v493 = vand.u32 %v113, 4294901760
    %494 = vmatmul.mubr.f32.gmra.mrb[0].mxu0 %v493
    %v495 = vpop.f32.mrb[0].mxu0
    %v496 = vadd.f32 %v314, %v495
    %v497 = vpop.f32.mrb[0].mxu0
    %498 = vmatprep.mubr.f32.mxu0 0.0
    %v499 = vand.u32 %v116, 4294901760
    %500 = vmatmul.mubr.f32.gmra.mrb[0].mxu0 %v499
    %v501 = vpop.f32.mrb[0].mxu0
    %v502 = vadd.f32 %v324, %v501
    %v503 = vpop.f32.mrb[0].mxu0
    %504 = vmatprep.mubr.f32.mxu0 0.0
    %v505 = vand.u32 %v119, 4294901760
    %506 = vmatmul.mubr.f32.gmra.mrb[0].mxu0 %v505
    %v507 = vpop.f32.mrb[0].mxu0
    %v508 = vadd.f32 %v334, %v507
    %v509 = vpop.f32.mrb[0].mxu0
    %510 = vmatprep.mubr.f32.mxu0 0.0
    %v511 = vand.u32 %v122, 4294901760
    %512 = vmatmul.mubr.f32.gmra.mrb[0].mxu0 %v511
    %v513 = vpop.f32.mrb[0].mxu0
    %v514 = vadd.f32 %v344, %v513
    %v515 = vpop.f32.mrb[0].mxu0
    %516 = vmatprep.mubr.f32.mxu0 0.0
    %v517 = vand.u32 %v125, 4294901760
    %518 = vmatmul.mubr.f32.gmra.mrb[0].mxu0 %v517
    %v519 = vpop.f32.mrb[0].mxu0
    %v520 = vadd.f32 %v354, %v519
    %v521 = vpop.f32.mrb[0].mxu0
    %522 = vdwg.mxu0
    %523 = vmatprep.subr.mxu0 0.0
    %v524 = vand.u32 %v129, 4294901760
    %v525 = vsub.f32 %v129, %v524
    %526 = vmatpush1.msra.mxu0 %v525
    %527 = vmatprep.subr.mxu0 0.0
    %528 = vmatpush1.msra.mxu0 0.0
    %529 = vmatprep.subr.mxu0 0.0
    %530 = vmatpush1.msra.mxu0 0.0
    %531 = vmatprep.subr.mxu0 0.0
    %532 = vmatpush1.msra.mxu0 0.0
    %533 = vmatprep.subr.mxu0 0.0
    %534 = vmatpush1.msra.mxu0 0.0
    %535 = vmatprep.subr.mxu0 0.0
    %536 = vmatpush1.msra.mxu0 0.0
    %537 = vmatprep.subr.mxu0 0.0
    %538 = vmatpush1.msra.mxu0 0.0
    %539 = vmatprep.subr.mxu0 0.0
    %540 = vmatpush1.msra.mxu0 0.0
    %541 = vmatprep.subr.mxu0 0.0
    %542 = vmatpush1.msra.mxu0 0.0
    %543 = vmatprep.subr.mxu0 0.0
    %544 = vmatpush1.msra.mxu0 0.0
    %545 = vmatprep.subr.mxu0 0.0
    %546 = vmatpush1.msra.mxu0 0.0
    %547 = vmatprep.subr.mxu0 0.0
    %548 = vmatpush1.msra.mxu0 0.0
    %549 = vmatprep.subr.mxu0 0.0
    %550 = vmatpush1.msra.mxu0 0.0
    %551 = vmatprep.subr.mxu0 0.0
    %552 = vmatpush1.msra.mxu0 0.0
    %553 = vmatprep.subr.mxu0 0.0
    %554 = vmatpush1.msra.mxu0 0.0
    %555 = vmatprep.subr.mxu0 0.0
    %556 = vmatpush1.msra.mxu0 0.0
    %557 = vmatprep.subr.mxu0 0.0
    %558 = vmatpush1.msra.mxu0 0.0
    %559 = vmatprep.subr.mxu0 0.0
    %560 = vmatpush1.msra.mxu0 0.0
    %561 = vmatprep.subr.mxu0 0.0
    %562 = vmatpush1.msra.mxu0 0.0
    %563 = vmatprep.subr.mxu0 0.0
    %564 = vmatpush1.msra.mxu0 0.0
    %565 = vmatprep.subr.mxu0 0.0
    %566 = vmatpush1.msra.mxu0 0.0
    %567 = vmatprep.subr.mxu0 0.0
    %568 = vmatpush1.msra.mxu0 0.0
    %569 = vmatprep.subr.mxu0 0.0
    %570 = vmatpush1.msra.mxu0 0.0
    %571 = vmatprep.subr.mxu0 0.0
    %572 = vmatpush1.msra.mxu0 0.0
    %573 = vmatprep.subr.mxu0 0.0
    %574 = vmatpush1.msra.mxu0 0.0
    %575 = vmatprep.subr.mxu0 0.0
    %576 = vmatpush1.msra.mxu0 0.0
    %577 = vmatprep.subr.mxu0 0.0
    %578 = vmatpush1.msra.mxu0 0.0
    %579 = vmatprep.subr.mxu0 0.0
    %580 = vmatpush1.msra.mxu0 0.0
    %581 = vmatprep.subr.mxu0 0.0
    %582 = vmatpush1.msra.mxu0 0.0
    %583 = vmatprep.subr.mxu0 0.0
    %584 = vmatpush1.msra.mxu0 0.0
    %585 = vmatprep.subr.mxu0 0.0
    %586 = vmatpush1.msra.mxu0 0.0
    %587 = vmatprep.subr.mxu0 0.0
    %588 = vmatpush1.msra.mxu0 0.0
    %589 = vmatprep.mubr.f32.mxu0 0.0
    %v590 = vand.u32 %v80, 4294901760
    %v591 = vsub.f32 %v80, %v590
    %592 = vmatmul.mubr.f32.gmra.mrb[0].mxu0 %v591
    %v593 = vpop.f32.mrb[0].mxu0
    %v594 = vadd.f32 %v430, %v593
    %v595 = vpop.f32.mrb[0].mxu0
    %596 = vmatprep.mubr.f32.mxu0 0.0
    %v597 = vand.u32 %v83, 4294901760
    %v598 = vsub.f32 %v83, %v597
    %599 = vmatmul.mubr.f32.gmra.mrb[0].mxu0 %v598
    %v600 = vpop.f32.mrb[0].mxu0
    %v601 = vadd.f32 %v436, %v600
    %v602 = vpop.f32.mrb[0].mxu0
    %603 = vmatprep.mubr.f32.mxu0 0.0
    %v604 = vand.u32 %v86, 4294901760
    %v605 = vsub.f32 %v86, %v604
    %606 = vmatmul.mubr.f32.gmra.mrb[0].mxu0 %v605
    %v607 = vpop.f32.mrb[0].mxu0
    %v608 = vadd.f32 %v442, %v607
    %v609 = vpop.f32.mrb[0].mxu0
    %610 = vmatprep.mubr.f32.mxu0 0.0
    %v611 = vand.u32 %v89, 4294901760
    %v612 = vsub.f32 %v89, %v611
    %613 = vmatmul.mubr.f32.gmra.mrb[0].mxu0 %v612
    %v614 = vpop.f32.mrb[0].mxu0
    %v615 = vadd.f32 %v448, %v614
    %v616 = vpop.f32.mrb[0].mxu0
    %617 = vmatprep.mubr.f32.mxu0 0.0
    %v618 = vand.u32 %v92, 4294901760
    %v619 = vsub.f32 %v92, %v618
    %620 = vmatmul.mubr.f32.gmra.mrb[0].mxu0 %v619
    %v621 = vpop.f32.mrb[0].mxu0
    %v622 = vadd.f32 %v454, %v621
    %v623 = vpop.f32.mrb[0].mxu0
    %624 = vmatprep.mubr.f32.mxu0 0.0
    %v625 = vand.u32 %v95, 4294901760
    %v626 = vsub.f32 %v95, %v625
    %627 = vmatmul.mubr.f32.gmra.mrb[0].mxu0 %v626
    %v628 = vpop.f32.mrb[0].mxu0
    %v629 = vadd.f32 %v460, %v628
    %v630 = vpop.f32.mrb[0].mxu0
    %631 = vmatprep.mubr.f32.mxu0 0.0
    %v632 = vand.u32 %v98, 4294901760
    %v633 = vsub.f32 %v98, %v632
    %634 = vmatmul.mubr.f32.gmra.mrb[0].mxu0 %v633
    %v635 = vpop.f32.mrb[0].mxu0
    %v636 = vadd.f32 %v466, %v635
    %v637 = vpop.f32.mrb[0].mxu0
    %638 = vmatprep.mubr.f32.mxu0 0.0
    %v639 = vand.u32 %v101, 4294901760
    %v640 = vsub.f32 %v101, %v639
    %641 = vmatmul.mubr.f32.gmra.mrb[0].mxu0 %v640
    %v642 = vpop.f32.mrb[0].mxu0
    %v643 = vadd.f32 %v472, %v642
    %v644 = vpop.f32.mrb[0].mxu0
    %645 = vmatprep.mubr.f32.mxu0 0.0
    %v646 = vand.u32 %v104, 4294901760
    %v647 = vsub.f32 %v104, %v646
    %648 = vmatmul.mubr.f32.gmra.mrb[0].mxu0 %v647
    %v649 = vpop.f32.mrb[0].mxu0
    %v650 = vadd.f32 %v478, %v649
    %v651 = vpop.f32.mrb[0].mxu0
    %652 = vmatprep.mubr.f32.mxu0 0.0
    %v653 = vand.u32 %v107, 4294901760
    %v654 = vsub.f32 %v107, %v653
    %655 = vmatmul.mubr.f32.gmra.mrb[0].mxu0 %v654
    %v656 = vpop.f32.mrb[0].mxu0
    %v657 = vadd.f32 %v484, %v656
    %v658 = vpop.f32.mrb[0].mxu0
    %659 = vmatprep.mubr.f32.mxu0 0.0
    %v660 = vand.u32 %v110, 4294901760
    %v661 = vsub.f32 %v110, %v660
    %662 = vmatmul.mubr.f32.gmra.mrb[0].mxu0 %v661
    %v663 = vpop.f32.mrb[0].mxu0
    %v664 = vadd.f32 %v490, %v663
    %v665 = vpop.f32.mrb[0].mxu0
    %666 = vmatprep.mubr.f32.mxu0 0.0
    %v667 = vand.u32 %v113, 4294901760
    %v668 = vsub.f32 %v113, %v667
    %669 = vmatmul.mubr.f32.gmra.mrb[0].mxu0 %v668
    %v670 = vpop.f32.mrb[0].mxu0
    %v671 = vadd.f32 %v496, %v670
    %v672 = vpop.f32.mrb[0].mxu0
    %673 = vmatprep.mubr.f32.mxu0 0.0
    %v674 = vand.u32 %v116, 4294901760
    %v675 = vsub.f32 %v116, %v674
    %676 = vmatmul.mubr.f32.gmra.mrb[0].mxu0 %v675
    %v677 = vpop.f32.mrb[0].mxu0
    %v678 = vadd.f32 %v502, %v677
    %v679 = vpop.f32.mrb[0].mxu0
    %680 = vmatprep.mubr.f32.mxu0 0.0
    %v681 = vand.u32 %v119, 4294901760
    %v682 = vsub.f32 %v119, %v681
    %683 = vmatmul.mubr.f32.gmra.mrb[0].mxu0 %v682
    %v684 = vpop.f32.mrb[0].mxu0
    %v685 = vadd.f32 %v508, %v684
    %v686 = vpop.f32.mrb[0].mxu0
    %687 = vmatprep.mubr.f32.mxu0 0.0
    %v688 = vand.u32 %v122, 4294901760
    %v689 = vsub.f32 %v122, %v688
    %690 = vmatmul.mubr.f32.gmra.mrb[0].mxu0 %v689
    %v691 = vpop.f32.mrb[0].mxu0
    %v692 = vadd.f32 %v514, %v691
    %v693 = vpop.f32.mrb[0].mxu0
    %694 = vmatprep.mubr.f32.mxu0 0.0
    %v695 = vand.u32 %v125, 4294901760
    %v696 = vsub.f32 %v125, %v695
    %697 = vmatmul.mubr.f32.gmra.mrb[0].mxu0 %v696
    %v698 = vpop.f32.mrb[0].mxu0
    %v699 = vadd.f32 %v520, %v698
    %v700 = vpop.f32.mrb[0].mxu0
    %701 = vdwg.mxu0
    %702 = vmatprep.subr.mxu0 0.0
    %v703 = vand.u32 %v129, 4294901760
    %704 = vmatpush1.msra.mxu0 %v703
    %705 = vmatprep.subr.mxu0 0.0
    %706 = vmatpush1.msra.mxu0 0.0
    %707 = vmatprep.subr.mxu0 0.0
    %708 = vmatpush1.msra.mxu0 0.0
    %709 = vmatprep.subr.mxu0 0.0
    %710 = vmatpush1.msra.mxu0 0.0
    %711 = vmatprep.subr.mxu0 0.0
    %712 = vmatpush1.msra.mxu0 0.0
    %713 = vmatprep.subr.mxu0 0.0
    %714 = vmatpush1.msra.mxu0 0.0
    %715 = vmatprep.subr.mxu0 0.0
    %716 = vmatpush1.msra.mxu0 0.0
    %717 = vmatprep.subr.mxu0 0.0
    %718 = vmatpush1.msra.mxu0 0.0
    %719 = vmatprep.subr.mxu0 0.0
    %720 = vmatpush1.msra.mxu0 0.0
    %721 = vmatprep.subr.mxu0 0.0
    %722 = vmatpush1.msra.mxu0 0.0
    %723 = vmatprep.subr.mxu0 0.0
    %724 = vmatpush1.msra.mxu0 0.0
    %725 = vmatprep.subr.mxu0 0.0
    %726 = vmatpush1.msra.mxu0 0.0
    %727 = vmatprep.subr.mxu0 0.0
    %728 = vmatpush1.msra.mxu0 0.0
    %729 = vmatprep.subr.mxu0 0.0
    %730 = vmatpush1.msra.mxu0 0.0
    %731 = vmatprep.subr.mxu0 0.0
    %732 = vmatpush1.msra.mxu0 0.0
    %733 = vmatprep.subr.mxu0 0.0
    %734 = vmatpush1.msra.mxu0 0.0
    %735 = vmatprep.subr.mxu0 0.0
    %736 = vmatpush1.msra.mxu0 0.0
    %737 = vmatprep.subr.mxu0 0.0
    %738 = vmatpush1.msra.mxu0 0.0
    %739 = vmatprep.subr.mxu0 0.0
    %740 = vmatpush1.msra.mxu0 0.0
    %741 = vmatprep.subr.mxu0 0.0
    %742 = vmatpush1.msra.mxu0 0.0
    %743 = vmatprep.subr.mxu0 0.0
    %744 = vmatpush1.msra.mxu0 0.0
    %745 = vmatprep.subr.mxu0 0.0
    %746 = vmatpush1.msra.mxu0 0.0
    %747 = vmatprep.subr.mxu0 0.0
    %748 = vmatpush1.msra.mxu0 0.0
    %749 = vmatprep.subr.mxu0 0.0
    %750 = vmatpush1.msra.mxu0 0.0
    %751 = vmatprep.subr.mxu0 0.0
    %752 = vmatpush1.msra.mxu0 0.0
    %753 = vmatprep.subr.mxu0 0.0
    %754 = vmatpush1.msra.mxu0 0.0
    %755 = vmatprep.subr.mxu0 0.0
    %756 = vmatpush1.msra.mxu0 0.0
    %757 = vmatprep.subr.mxu0 0.0
    %758 = vmatpush1.msra.mxu0 0.0
    %759 = vmatprep.subr.mxu0 0.0
    %760 = vmatpush1.msra.mxu0 0.0
    %761 = vmatprep.subr.mxu0 0.0
    %762 = vmatpush1.msra.mxu0 0.0
    %763 = vmatprep.subr.mxu0 0.0
    %764 = vmatpush1.msra.mxu0 0.0
    %765 = vmatprep.subr.mxu0 0.0
    %766 = vmatpush1.msra.mxu0 0.0
    %767 = vmatprep.mubr.f32.mxu0 0.0
    %v768 = vand.u32 %v80, 4294901760
    %v769 = vsub.f32 %v80, %v768
    %v770 = vand.u32 %v769, 4294901760
    %771 = vmatmul.mubr.f32.gmra.mrb[0].mxu0 %v770
    %v772 = vpop.f32.mrb[0].mxu0
    %v773 = vadd.f32 %v594, %v772
    %v774 = vpop.f32.mrb[0].mxu0
    %775 = vmatprep.mubr.f32.mxu0 0.0
    %v776 = vand.u32 %v83, 4294901760
    %v777 = vsub.f32 %v83, %v776
    %v778 = vand.u32 %v777, 4294901760
    %779 = vmatmul.mubr.f32.gmra.mrb[0].mxu0 %v778
    %v780 = vpop.f32.mrb[0].mxu0
    %v781 = vadd.f32 %v601, %v780
    %v782 = vpop.f32.mrb[0].mxu0
    %783 = vmatprep.mubr.f32.mxu0 0.0
    %v784 = vand.u32 %v86, 4294901760
    %v785 = vsub.f32 %v86, %v784
    %v786 = vand.u32 %v785, 4294901760
    %787 = vmatmul.mubr.f32.gmra.mrb[0].mxu0 %v786
    %v788 = vpop.f32.mrb[0].mxu0
    %v789 = vadd.f32 %v608, %v788
    %v790 = vpop.f32.mrb[0].mxu0
    %791 = vmatprep.mubr.f32.mxu0 0.0
    %v792 = vand.u32 %v89, 4294901760
    %v793 = vsub.f32 %v89, %v792
    %v794 = vand.u32 %v793, 4294901760
    %795 = vmatmul.mubr.f32.gmra.mrb[0].mxu0 %v794
    %v796 = vpop.f32.mrb[0].mxu0
    %v797 = vadd.f32 %v615, %v796
    %v798 = vpop.f32.mrb[0].mxu0
    %799 = vmatprep.mubr.f32.mxu0 0.0
    %v800 = vand.u32 %v92, 4294901760
    %v801 = vsub.f32 %v92, %v800
    %v802 = vand.u32 %v801, 4294901760
    %803 = vmatmul.mubr.f32.gmra.mrb[0].mxu0 %v802
    %v804 = vpop.f32.mrb[0].mxu0
    %v805 = vadd.f32 %v622, %v804
    %v806 = vpop.f32.mrb[0].mxu0
    %807 = vmatprep.mubr.f32.mxu0 0.0
    %v808 = vand.u32 %v95, 4294901760
    %v809 = vsub.f32 %v95, %v808
    %v810 = vand.u32 %v809, 4294901760
    %811 = vmatmul.mubr.f32.gmra.mrb[0].mxu0 %v810
    %v812 = vpop.f32.mrb[0].mxu0
    %v813 = vadd.f32 %v629, %v812
    %v814 = vpop.f32.mrb[0].mxu0
    %815 = vmatprep.mubr.f32.mxu0 0.0
    %v816 = vand.u32 %v98, 4294901760
    %v817 = vsub.f32 %v98, %v816
    %v818 = vand.u32 %v817, 4294901760
    %819 = vmatmul.mubr.f32.gmra.mrb[0].mxu0 %v818
    %v820 = vpop.f32.mrb[0].mxu0
    %v821 = vadd.f32 %v636, %v820
    %v822 = vpop.f32.mrb[0].mxu0
    %823 = vmatprep.mubr.f32.mxu0 0.0
    %v824 = vand.u32 %v101, 4294901760
    %v825 = vsub.f32 %v101, %v824
    %v826 = vand.u32 %v825, 4294901760
    %827 = vmatmul.mubr.f32.gmra.mrb[0].mxu0 %v826
    %v828 = vpop.f32.mrb[0].mxu0
    %v829 = vadd.f32 %v643, %v828
    %v830 = vpop.f32.mrb[0].mxu0
    %831 = vmatprep.mubr.f32.mxu0 0.0
    %v832 = vand.u32 %v104, 4294901760
    %v833 = vsub.f32 %v104, %v832
    %v834 = vand.u32 %v833, 4294901760
    %835 = vmatmul.mubr.f32.gmra.mrb[0].mxu0 %v834
    %v836 = vpop.f32.mrb[0].mxu0
    %v837 = vadd.f32 %v650, %v836
    %v838 = vpop.f32.mrb[0].mxu0
    %839 = vmatprep.mubr.f32.mxu0 0.0
    %v840 = vand.u32 %v107, 4294901760
    %v841 = vsub.f32 %v107, %v840
    %v842 = vand.u32 %v841, 4294901760
    %843 = vmatmul.mubr.f32.gmra.mrb[0].mxu0 %v842
    %v844 = vpop.f32.mrb[0].mxu0
    %v845 = vadd.f32 %v657, %v844
    %v846 = vpop.f32.mrb[0].mxu0
    %847 = vmatprep.mubr.f32.mxu0 0.0
    %v848 = vand.u32 %v110, 4294901760
    %v849 = vsub.f32 %v110, %v848
    %v850 = vand.u32 %v849, 4294901760
    %851 = vmatmul.mubr.f32.gmra.mrb[0].mxu0 %v850
    %v852 = vpop.f32.mrb[0].mxu0
    %v853 = vadd.f32 %v664, %v852
    %v854 = vpop.f32.mrb[0].mxu0
    %855 = vmatprep.mubr.f32.mxu0 0.0
    %v856 = vand.u32 %v113, 4294901760
    %v857 = vsub.f32 %v113, %v856
    %v858 = vand.u32 %v857, 4294901760
    %859 = vmatmul.mubr.f32.gmra.mrb[0].mxu0 %v858
    %v860 = vpop.f32.mrb[0].mxu0
    %v861 = vadd.f32 %v671, %v860
    %v862 = vpop.f32.mrb[0].mxu0
    %863 = vmatprep.mubr.f32.mxu0 0.0
    %v864 = vand.u32 %v116, 4294901760
    %v865 = vsub.f32 %v116, %v864
    %v866 = vand.u32 %v865, 4294901760
    %867 = vmatmul.mubr.f32.gmra.mrb[0].mxu0 %v866
    %v868 = vpop.f32.mrb[0].mxu0
    %v869 = vadd.f32 %v678, %v868
    %v870 = vpop.f32.mrb[0].mxu0
    %871 = vmatprep.mubr.f32.mxu0 0.0
    %v872 = vand.u32 %v119, 4294901760
    %v873 = vsub.f32 %v119, %v872
    %v874 = vand.u32 %v873, 4294901760
    %875 = vmatmul.mubr.f32.gmra.mrb[0].mxu0 %v874
    %v876 = vpop.f32.mrb[0].mxu0
    %v877 = vadd.f32 %v685, %v876
    %v878 = vpop.f32.mrb[0].mxu0
    %879 = vmatprep.mubr.f32.mxu0 0.0
    %v880 = vand.u32 %v122, 4294901760
    %v881 = vsub.f32 %v122, %v880
    %v882 = vand.u32 %v881, 4294901760
    %883 = vmatmul.mubr.f32.gmra.mrb[0].mxu0 %v882
    %v884 = vpop.f32.mrb[0].mxu0
    %v885 = vadd.f32 %v692, %v884
    %v886 = vpop.f32.mrb[0].mxu0
    %887 = vmatprep.mubr.f32.mxu0 0.0
    %v888 = vand.u32 %v125, 4294901760
    %v889 = vsub.f32 %v125, %v888
    %v890 = vand.u32 %v889, 4294901760
    %891 = vmatmul.mubr.f32.gmra.mrb[0].mxu0 %v890
    %v892 = vpop.f32.mrb[0].mxu0
    %v893 = vadd.f32 %v699, %v892
    %v894 = vpop.f32.mrb[0].mxu0
    %895 = vdwg.mxu0
    %896 = vmatprep.subr.mxu0 0.0
    %v897 = vand.u32 %v129, 4294901760
    %v898 = vsub.f32 %v129, %v897
    %v899 = vand.u32 %v898, 4294901760
    %900 = vmatpush1.msra.mxu0 %v899
    %901 = vmatprep.subr.mxu0 0.0
    %902 = vmatpush1.msra.mxu0 0.0
    %903 = vmatprep.subr.mxu0 0.0
    %904 = vmatpush1.msra.mxu0 0.0
    %905 = vmatprep.subr.mxu0 0.0
    %906 = vmatpush1.msra.mxu0 0.0
    %907 = vmatprep.subr.mxu0 0.0
    %908 = vmatpush1.msra.mxu0 0.0
    %909 = vmatprep.subr.mxu0 0.0
    %910 = vmatpush1.msra.mxu0 0.0
    %911 = vmatprep.subr.mxu0 0.0
    %912 = vmatpush1.msra.mxu0 0.0
    %913 = vmatprep.subr.mxu0 0.0
    %914 = vmatpush1.msra.mxu0 0.0
    %915 = vmatprep.subr.mxu0 0.0
    %916 = vmatpush1.msra.mxu0 0.0
    %917 = vmatprep.subr.mxu0 0.0
    %918 = vmatpush1.msra.mxu0 0.0
    %919 = vmatprep.subr.mxu0 0.0
    %920 = vmatpush1.msra.mxu0 0.0
    %921 = vmatprep.subr.mxu0 0.0
    %922 = vmatpush1.msra.mxu0 0.0
    %923 = vmatprep.subr.mxu0 0.0
    %924 = vmatpush1.msra.mxu0 0.0
    %925 = vmatprep.subr.mxu0 0.0
    %926 = vmatpush1.msra.mxu0 0.0
    %927 = vmatprep.subr.mxu0 0.0
    %928 = vmatpush1.msra.mxu0 0.0
    %929 = vmatprep.subr.mxu0 0.0
    %930 = vmatpush1.msra.mxu0 0.0
    %931 = vmatprep.subr.mxu0 0.0
    %932 = vmatpush1.msra.mxu0 0.0
    %933 = vmatprep.subr.mxu0 0.0
    %934 = vmatpush1.msra.mxu0 0.0
    %935 = vmatprep.subr.mxu0 0.0
    %936 = vmatpush1.msra.mxu0 0.0
    %937 = vmatprep.subr.mxu0 0.0
    %938 = vmatpush1.msra.mxu0 0.0
    %939 = vmatprep.subr.mxu0 0.0
    %940 = vmatpush1.msra.mxu0 0.0
    %941 = vmatprep.subr.mxu0 0.0
    %942 = vmatpush1.msra.mxu0 0.0
    %943 = vmatprep.subr.mxu0 0.0
    %944 = vmatpush1.msra.mxu0 0.0
    %945 = vmatprep.subr.mxu0 0.0
    %946 = vmatpush1.msra.mxu0 0.0
    %947 = vmatprep.subr.mxu0 0.0
    %948 = vmatpush1.msra.mxu0 0.0
    %949 = vmatprep.subr.mxu0 0.0
    %950 = vmatpush1.msra.mxu0 0.0
    %951 = vmatprep.subr.mxu0 0.0
    %952 = vmatpush1.msra.mxu0 0.0
    %953 = vmatprep.subr.mxu0 0.0
    %954 = vmatpush1.msra.mxu0 0.0
    %955 = vmatprep.subr.mxu0 0.0
    %956 = vmatpush1.msra.mxu0 0.0
    %957 = vmatprep.subr.mxu0 0.0
    %958 = vmatpush1.msra.mxu0 0.0
    %959 = vmatprep.subr.mxu0 0.0
    %960 = vmatpush1.msra.mxu0 0.0
    %961 = vmatprep.subr.mxu0 0.0
    %962 = vmatpush1.msra.mxu0 0.0
    %963 = vmatprep.mubr.f32.mxu0 0.0
    %v964 = vand.u32 %v80, 4294901760
    %965 = vmatmul.mubr.f32.gmra.mrb[0].mxu0 %v964
    %v966 = vpop.f32.mrb[0].mxu0
    %v967 = vadd.f32 %v773, %v966
    %v968 = vpop.f32.mrb[0].mxu0
    %969 = vmatprep.mubr.f32.mxu0 0.0
    %v970 = vand.u32 %v83, 4294901760
    %971 = vmatmul.mubr.f32.gmra.mrb[0].mxu0 %v970
    %v972 = vpop.f32.mrb[0].mxu0
    %v973 = vadd.f32 %v781, %v972
    %v974 = vpop.f32.mrb[0].mxu0
    %975 = vmatprep.mubr.f32.mxu0 0.0
    %v976 = vand.u32 %v86, 4294901760
    %977 = vmatmul.mubr.f32.gmra.mrb[0].mxu0 %v976
    %v978 = vpop.f32.mrb[0].mxu0
    %v979 = vadd.f32 %v789, %v978
    %v980 = vpop.f32.mrb[0].mxu0
    %981 = vmatprep.mubr.f32.mxu0 0.0
    %v982 = vand.u32 %v89, 4294901760
    %983 = vmatmul.mubr.f32.gmra.mrb[0].mxu0 %v982
    %v984 = vpop.f32.mrb[0].mxu0
    %v985 = vadd.f32 %v797, %v984
    %v986 = vpop.f32.mrb[0].mxu0
    %987 = vmatprep.mubr.f32.mxu0 0.0
    %v988 = vand.u32 %v92, 4294901760
    %989 = vmatmul.mubr.f32.gmra.mrb[0].mxu0 %v988
    %v990 = vpop.f32.mrb[0].mxu0
    %v991 = vadd.f32 %v805, %v990
    %v992 = vpop.f32.mrb[0].mxu0
    %993 = vmatprep.mubr.f32.mxu0 0.0
    %v994 = vand.u32 %v95, 4294901760
    %995 = vmatmul.mubr.f32.gmra.mrb[0].mxu0 %v994
    %v996 = vpop.f32.mrb[0].mxu0
    %v997 = vadd.f32 %v813, %v996
    %v998 = vpop.f32.mrb[0].mxu0
    %999 = vmatprep.mubr.f32.mxu0 0.0
    %v1000 = vand.u32 %v98, 4294901760
    %1001 = vmatmul.mubr.f32.gmra.mrb[0].mxu0 %v1000
    %v1002 = vpop.f32.mrb[0].mxu0
    %v1003 = vadd.f32 %v821, %v1002
    %v1004 = vpop.f32.mrb[0].mxu0
    %1005 = vmatprep.mubr.f32.mxu0 0.0
    %v1006 = vand.u32 %v101, 4294901760
    %1007 = vmatmul.mubr.f32.gmra.mrb[0].mxu0 %v1006
    %v1008 = vpop.f32.mrb[0].mxu0
    %v1009 = vadd.f32 %v829, %v1008
    %v1010 = vpop.f32.mrb[0].mxu0
    %1011 = vmatprep.mubr.f32.mxu0 0.0
    %v1012 = vand.u32 %v104, 4294901760
    %1013 = vmatmul.mubr.f32.gmra.mrb[0].mxu0 %v1012
    %v1014 = vpop.f32.mrb[0].mxu0
    %v1015 = vadd.f32 %v837, %v1014
    %v1016 = vpop.f32.mrb[0].mxu0
    %1017 = vmatprep.mubr.f32.mxu0 0.0
    %v1018 = vand.u32 %v107, 4294901760
    %1019 = vmatmul.mubr.f32.gmra.mrb[0].mxu0 %v1018
    %v1020 = vpop.f32.mrb[0].mxu0
    %v1021 = vadd.f32 %v845, %v1020
    %v1022 = vpop.f32.mrb[0].mxu0
    %1023 = vmatprep.mubr.f32.mxu0 0.0
    %v1024 = vand.u32 %v110, 4294901760
    %1025 = vmatmul.mubr.f32.gmra.mrb[0].mxu0 %v1024
    %v1026 = vpop.f32.mrb[0].mxu0
    %v1027 = vadd.f32 %v853, %v1026
    %v1028 = vpop.f32.mrb[0].mxu0
    %1029 = vmatprep.mubr.f32.mxu0 0.0
    %v1030 = vand.u32 %v113, 4294901760
    %1031 = vmatmul.mubr.f32.gmra.mrb[0].mxu0 %v1030
    %v1032 = vpop.f32.mrb[0].mxu0
    %v1033 = vadd.f32 %v861, %v1032
    %v1034 = vpop.f32.mrb[0].mxu0
    %1035 = vmatprep.mubr.f32.mxu0 0.0
    %v1036 = vand.u32 %v116, 4294901760
    %1037 = vmatmul.mubr.f32.gmra.mrb[0].mxu0 %v1036
    %v1038 = vpop.f32.mrb[0].mxu0
    %v1039 = vadd.f32 %v869, %v1038
    %v1040 = vpop.f32.mrb[0].mxu0
    %1041 = vmatprep.mubr.f32.mxu0 0.0
    %v1042 = vand.u32 %v119, 4294901760
    %1043 = vmatmul.mubr.f32.gmra.mrb[0].mxu0 %v1042
    %v1044 = vpop.f32.mrb[0].mxu0
    %v1045 = vadd.f32 %v877, %v1044
    %v1046 = vpop.f32.mrb[0].mxu0
    %1047 = vmatprep.mubr.f32.mxu0 0.0
    %v1048 = vand.u32 %v122, 4294901760
    %1049 = vmatmul.mubr.f32.gmra.mrb[0].mxu0 %v1048
    %v1050 = vpop.f32.mrb[0].mxu0
    %v1051 = vadd.f32 %v885, %v1050
    %v1052 = vpop.f32.mrb[0].mxu0
    %1053 = vmatprep.mubr.f32.mxu0 0.0
    %v1054 = vand.u32 %v125, 4294901760
    %1055 = vmatmul.mubr.f32.gmra.mrb[0].mxu0 %v1054
    %v1056 = vpop.f32.mrb[0].mxu0
    %v1057 = vadd.f32 %v893, %v1056
    %v1058 = vpop.f32.mrb[0].mxu0
    %1059 = vdwg.mxu0
    %1060 = vmatprep.subr.mxu0 0.0
    %v1061 = vand.u32 %v129, 4294901760
    %1062 = vmatpush1.msra.mxu0 %v1061
    %1063 = vmatprep.subr.mxu0 0.0
    %1064 = vmatpush1.msra.mxu0 0.0
    %1065 = vmatprep.subr.mxu0 0.0
    %1066 = vmatpush1.msra.mxu0 0.0
    %1067 = vmatprep.subr.mxu0 0.0
    %1068 = vmatpush1.msra.mxu0 0.0
    %1069 = vmatprep.subr.mxu0 0.0
    %1070 = vmatpush1.msra.mxu0 0.0
    %1071 = vmatprep.subr.mxu0 0.0
    %1072 = vmatpush1.msra.mxu0 0.0
    %1073 = vmatprep.subr.mxu0 0.0
    %1074 = vmatpush1.msra.mxu0 0.0
    %1075 = vmatprep.subr.mxu0 0.0
    %1076 = vmatpush1.msra.mxu0 0.0
    %1077 = vmatprep.subr.mxu0 0.0
    %1078 = vmatpush1.msra.mxu0 0.0
    %1079 = vmatprep.subr.mxu0 0.0
    %1080 = vmatpush1.msra.mxu0 0.0
    %1081 = vmatprep.subr.mxu0 0.0
    %1082 = vmatpush1.msra.mxu0 0.0
    %1083 = vmatprep.subr.mxu0 0.0
    %1084 = vmatpush1.msra.mxu0 0.0
    %1085 = vmatprep.subr.mxu0 0.0
    %1086 = vmatpush1.msra.mxu0 0.0
    %1087 = vmatprep.subr.mxu0 0.0
    %1088 = vmatpush1.msra.mxu0 0.0
    %1089 = vmatprep.subr.mxu0 0.0
    %1090 = vmatpush1.msra.mxu0 0.0
    %1091 = vmatprep.subr.mxu0 0.0
    %1092 = vmatpush1.msra.mxu0 0.0
    %1093 = vmatprep.subr.mxu0 0.0
    %1094 = vmatpush1.msra.mxu0 0.0
    %1095 = vmatprep.subr.mxu0 0.0
    %1096 = vmatpush1.msra.mxu0 0.0
    %1097 = vmatprep.subr.mxu0 0.0
    %1098 = vmatpush1.msra.mxu0 0.0
    %1099 = vmatprep.subr.mxu0 0.0
    %1100 = vmatpush1.msra.mxu0 0.0
    %1101 = vmatprep.subr.mxu0 0.0
    %1102 = vmatpush1.msra.mxu0 0.0
    %1103 = vmatprep.subr.mxu0 0.0
    %1104 = vmatpush1.msra.mxu0 0.0
    %1105 = vmatprep.subr.mxu0 0.0
    %1106 = vmatpush1.msra.mxu0 0.0
    %1107 = vmatprep.subr.mxu0 0.0
    %1108 = vmatpush1.msra.mxu0 0.0
    %1109 = vmatprep.subr.mxu0 0.0
    %1110 = vmatpush1.msra.mxu0 0.0
    %1111 = vmatprep.subr.mxu0 0.0
    %1112 = vmatpush1.msra.mxu0 0.0
    %1113 = vmatprep.subr.mxu0 0.0
    %1114 = vmatpush1.msra.mxu0 0.0
    %1115 = vmatprep.subr.mxu0 0.0
    %1116 = vmatpush1.msra.mxu0 0.0
    %1117 = vmatprep.subr.mxu0 0.0
    %1118 = vmatpush1.msra.mxu0 0.0
    %1119 = vmatprep.subr.mxu0 0.0
    %1120 = vmatpush1.msra.mxu0 0.0
    %1121 = vmatprep.subr.mxu0 0.0
    %1122 = vmatpush1.msra.mxu0 0.0
    %1123 = vmatprep.subr.mxu0 0.0
    %1124 = vmatpush1.msra.mxu0 0.0
    %1125 = vmatprep.mubr.f32.mxu0 0.0
    %v1126 = vand.u32 %v80, 4294901760
    %1127 = vmatmul.mubr.f32.gmra.mrb[0].mxu0 %v1126
    %v1128 = vpop.f32.mrb[0].mxu0
    %v1129 = vadd.f32 %v967, %v1128
    %v1130 = vpop.f32.mrb[0].mxu0
    %1131 = vmatprep.mubr.f32.mxu0 0.0
    %v1132 = vand.u32 %v83, 4294901760
    %1133 = vmatmul.mubr.f32.gmra.mrb[0].mxu0 %v1132
    %v1134 = vpop.f32.mrb[0].mxu0
    %v1135 = vadd.f32 %v973, %v1134
    %v1136 = vpop.f32.mrb[0].mxu0
    %1137 = vmatprep.mubr.f32.mxu0 0.0
    %v1138 = vand.u32 %v86, 4294901760
    %1139 = vmatmul.mubr.f32.gmra.mrb[0].mxu0 %v1138
    %v1140 = vpop.f32.mrb[0].mxu0
    %v1141 = vadd.f32 %v979, %v1140
    %v1142 = vpop.f32.mrb[0].mxu0
    %1143 = vmatprep.mubr.f32.mxu0 0.0
    %v1144 = vand.u32 %v89, 4294901760
    %1145 = vmatmul.mubr.f32.gmra.mrb[0].mxu0 %v1144
    %v1146 = vpop.f32.mrb[0].mxu0
    %v1147 = vadd.f32 %v985, %v1146
    %v1148 = vpop.f32.mrb[0].mxu0
    %1149 = vmatprep.mubr.f32.mxu0 0.0
    %v1150 = vand.u32 %v92, 4294901760
    %1151 = vmatmul.mubr.f32.gmra.mrb[0].mxu0 %v1150
    %v1152 = vpop.f32.mrb[0].mxu0
    %v1153 = vadd.f32 %v991, %v1152
    %v1154 = vpop.f32.mrb[0].mxu0
    %1155 = vmatprep.mubr.f32.mxu0 0.0
    %v1156 = vand.u32 %v95, 4294901760
    %1157 = vmatmul.mubr.f32.gmra.mrb[0].mxu0 %v1156
    %v1158 = vpop.f32.mrb[0].mxu0
    %v1159 = vadd.f32 %v997, %v1158
    %v1160 = vpop.f32.mrb[0].mxu0
    %1161 = vmatprep.mubr.f32.mxu0 0.0
    %v1162 = vand.u32 %v98, 4294901760
    %1163 = vmatmul.mubr.f32.gmra.mrb[0].mxu0 %v1162
    %v1164 = vpop.f32.mrb[0].mxu0
    %v1165 = vadd.f32 %v1003, %v1164
    %v1166 = vpop.f32.mrb[0].mxu0
    %1167 = vmatprep.mubr.f32.mxu0 0.0
    %v1168 = vand.u32 %v101, 4294901760
    %1169 = vmatmul.mubr.f32.gmra.mrb[0].mxu0 %v1168
    %v1170 = vpop.f32.mrb[0].mxu0
    %v1171 = vadd.f32 %v1009, %v1170
    %v1172 = vpop.f32.mrb[0].mxu0
    %1173 = vmatprep.mubr.f32.mxu0 0.0
    %v1174 = vand.u32 %v104, 4294901760
    %1175 = vmatmul.mubr.f32.gmra.mrb[0].mxu0 %v1174
    %v1176 = vpop.f32.mrb[0].mxu0
    %v1177 = vadd.f32 %v1015, %v1176
    %v1178 = vpop.f32.mrb[0].mxu0
    %1179 = vmatprep.mubr.f32.mxu0 0.0
    %v1180 = vand.u32 %v107, 4294901760
    %1181 = vmatmul.mubr.f32.gmra.mrb[0].mxu0 %v1180
    %v1182 = vpop.f32.mrb[0].mxu0
    %v1183 = vadd.f32 %v1021, %v1182
    %v1184 = vpop.f32.mrb[0].mxu0
    %1185 = vmatprep.mubr.f32.mxu0 0.0
    %v1186 = vand.u32 %v110, 4294901760
    %1187 = vmatmul.mubr.f32.gmra.mrb[0].mxu0 %v1186
    %v1188 = vpop.f32.mrb[0].mxu0
    %v1189 = vadd.f32 %v1027, %v1188
    %v1190 = vpop.f32.mrb[0].mxu0
    %1191 = vmatprep.mubr.f32.mxu0 0.0
    %v1192 = vand.u32 %v113, 4294901760
    %1193 = vmatmul.mubr.f32.gmra.mrb[0].mxu0 %v1192
    %v1194 = vpop.f32.mrb[0].mxu0
    %v1195 = vadd.f32 %v1033, %v1194
    %v1196 = vpop.f32.mrb[0].mxu0
    %1197 = vmatprep.mubr.f32.mxu0 0.0
    %v1198 = vand.u32 %v116, 4294901760
    %1199 = vmatmul.mubr.f32.gmra.mrb[0].mxu0 %v1198
    %v1200 = vpop.f32.mrb[0].mxu0
    %v1201 = vadd.f32 %v1039, %v1200
    %v1202 = vpop.f32.mrb[0].mxu0
    %1203 = vmatprep.mubr.f32.mxu0 0.0
    %v1204 = vand.u32 %v119, 4294901760
    %1205 = vmatmul.mubr.f32.gmra.mrb[0].mxu0 %v1204
    %v1206 = vpop.f32.mrb[0].mxu0
    %v1207 = vadd.f32 %v1045, %v1206
    %v1208 = vpop.f32.mrb[0].mxu0
    %1209 = vmatprep.mubr.f32.mxu0 0.0
    %v1210 = vand.u32 %v122, 4294901760
    %1211 = vmatmul.mubr.f32.gmra.mrb[0].mxu0 %v1210
    %v1212 = vpop.f32.mrb[0].mxu0
    %v1213 = vadd.f32 %v1051, %v1212
    %v1214 = vpop.f32.mrb[0].mxu0
    %1215 = vmatprep.mubr.f32.mxu0 0.0
    %v1216 = vand.u32 %v125, 4294901760
    %1217 = vmatmul.mubr.f32.gmra.mrb[0].mxu0 %v1216
    %v1218 = vpop.f32.mrb[0].mxu0
    %v1219 = vadd.f32 %v1057, %v1218
    %v1220 = vpop.f32.mrb[0].mxu0
    %1221 = vdwg.mxu0
    %v1223 = vsel %vm78, %v60, 0
    %v1226 = vsel %vm78, %v61, 0
    %v1229 = vsel %vm78, %v62, 0
    %v1232 = vsel %vm78, %v63, 0
    %v1235 = vsel %vm78, %v64, 0
    %v1238 = vsel %vm78, %v65, 0
    %v1241 = vsel %vm78, %v66, 0
    %v1244 = vsel %vm78, %v67, 0
    %v1247 = vsel %vm78, %v68, 0
    %v1250 = vsel %vm78, %v69, 0
    %v1253 = vsel %vm78, %v70, 0
    %v1256 = vsel %vm78, %v71, 0
    %v1259 = vsel %vm78, %v72, 0
    %v1262 = vsel %vm78, %v73, 0
    %v1265 = vsel %vm78, %v74, 0
    %v1268 = vsel %vm78, %v75, 0
    %v1271 = vsel %vm127, %v76, 0
    %1273 = vmatprep.subr.mxu0 0.0
    %v1274 = vand.u32 %v1271, 4294901760
    %1275 = vmatpush1.msra.mxu0 %v1274
    %1276 = vmatprep.subr.mxu0 0.0
    %1277 = vmatpush1.msra.mxu0 0.0
    %1278 = vmatprep.subr.mxu0 0.0
    %1279 = vmatpush1.msra.mxu0 0.0
    %1280 = vmatprep.subr.mxu0 0.0
    %1281 = vmatpush1.msra.mxu0 0.0
    %1282 = vmatprep.subr.mxu0 0.0
    %1283 = vmatpush1.msra.mxu0 0.0
    %1284 = vmatprep.subr.mxu0 0.0
    %1285 = vmatpush1.msra.mxu0 0.0
    %1286 = vmatprep.subr.mxu0 0.0
    %1287 = vmatpush1.msra.mxu0 0.0
    %1288 = vmatprep.subr.mxu0 0.0
    %1289 = vmatpush1.msra.mxu0 0.0
    %1290 = vmatprep.subr.mxu0 0.0
    %1291 = vmatpush1.msra.mxu0 0.0
    %1292 = vmatprep.subr.mxu0 0.0
    %1293 = vmatpush1.msra.mxu0 0.0
    %1294 = vmatprep.subr.mxu0 0.0
    %1295 = vmatpush1.msra.mxu0 0.0
    %1296 = vmatprep.subr.mxu0 0.0
    %1297 = vmatpush1.msra.mxu0 0.0
    %1298 = vmatprep.subr.mxu0 0.0
    %1299 = vmatpush1.msra.mxu0 0.0
    %1300 = vmatprep.subr.mxu0 0.0
    %1301 = vmatpush1.msra.mxu0 0.0
    %1302 = vmatprep.subr.mxu0 0.0
    %1303 = vmatpush1.msra.mxu0 0.0
    %1304 = vmatprep.subr.mxu0 0.0
    %1305 = vmatpush1.msra.mxu0 0.0
    %1306 = vmatprep.subr.mxu0 0.0
    %1307 = vmatpush1.msra.mxu0 0.0
    %1308 = vmatprep.subr.mxu0 0.0
    %1309 = vmatpush1.msra.mxu0 0.0
    %1310 = vmatprep.subr.mxu0 0.0
    %1311 = vmatpush1.msra.mxu0 0.0
    %1312 = vmatprep.subr.mxu0 0.0
    %1313 = vmatpush1.msra.mxu0 0.0
    %1314 = vmatprep.subr.mxu0 0.0
    %1315 = vmatpush1.msra.mxu0 0.0
    %1316 = vmatprep.subr.mxu0 0.0
    %1317 = vmatpush1.msra.mxu0 0.0
    %1318 = vmatprep.subr.mxu0 0.0
    %1319 = vmatpush1.msra.mxu0 0.0
    %1320 = vmatprep.subr.mxu0 0.0
    %1321 = vmatpush1.msra.mxu0 0.0
    %1322 = vmatprep.subr.mxu0 0.0
    %1323 = vmatpush1.msra.mxu0 0.0
    %1324 = vmatprep.subr.mxu0 0.0
    %1325 = vmatpush1.msra.mxu0 0.0
    %1326 = vmatprep.subr.mxu0 0.0
    %1327 = vmatpush1.msra.mxu0 0.0
    %1328 = vmatprep.subr.mxu0 0.0
    %1329 = vmatpush1.msra.mxu0 0.0
    %1330 = vmatprep.subr.mxu0 0.0
    %1331 = vmatpush1.msra.mxu0 0.0
    %1332 = vmatprep.subr.mxu0 0.0
    %1333 = vmatpush1.msra.mxu0 0.0
    %1334 = vmatprep.subr.mxu0 0.0
    %1335 = vmatpush1.msra.mxu0 0.0
    %1336 = vmatprep.subr.mxu0 0.0
    %1337 = vmatpush1.msra.mxu0 0.0
    %1338 = vmatprep.mubr.f32.mxu0 0.0
    %v1339 = vand.u32 %v1223, 4294901760
    %v1340 = vsub.f32 %v1223, %v1339
    %v1341 = vand.u32 %v1340, 4294901760
    %v1342 = vsub.f32 %v1340, %v1341
    %v1343 = vand.u32 %v1342, 4294901760
    %1344 = vmatmul.mubr.f32.gmra.mrb[0].mxu0 %v1343
    %v1345 = vpop.f32.mrb[0].mxu0
    %v1346 = vadd.f32 %v1129, %v1345
    %v1347 = vpop.f32.mrb[0].mxu0
    %1348 = vmatprep.mubr.f32.mxu0 0.0
    %v1349 = vand.u32 %v1226, 4294901760
    %v1350 = vsub.f32 %v1226, %v1349
    %v1351 = vand.u32 %v1350, 4294901760
    %v1352 = vsub.f32 %v1350, %v1351
    %v1353 = vand.u32 %v1352, 4294901760
    %1354 = vmatmul.mubr.f32.gmra.mrb[0].mxu0 %v1353
    %v1355 = vpop.f32.mrb[0].mxu0
    %v1356 = vadd.f32 %v1135, %v1355
    %v1357 = vpop.f32.mrb[0].mxu0
    %1358 = vmatprep.mubr.f32.mxu0 0.0
    %v1359 = vand.u32 %v1229, 4294901760
    %v1360 = vsub.f32 %v1229, %v1359
    %v1361 = vand.u32 %v1360, 4294901760
    %v1362 = vsub.f32 %v1360, %v1361
    %v1363 = vand.u32 %v1362, 4294901760
    %1364 = vmatmul.mubr.f32.gmra.mrb[0].mxu0 %v1363
    %v1365 = vpop.f32.mrb[0].mxu0
    %v1366 = vadd.f32 %v1141, %v1365
    %v1367 = vpop.f32.mrb[0].mxu0
    %1368 = vmatprep.mubr.f32.mxu0 0.0
    %v1369 = vand.u32 %v1232, 4294901760
    %v1370 = vsub.f32 %v1232, %v1369
    %v1371 = vand.u32 %v1370, 4294901760
    %v1372 = vsub.f32 %v1370, %v1371
    %v1373 = vand.u32 %v1372, 4294901760
    %1374 = vmatmul.mubr.f32.gmra.mrb[0].mxu0 %v1373
    %v1375 = vpop.f32.mrb[0].mxu0
    %v1376 = vadd.f32 %v1147, %v1375
    %v1377 = vpop.f32.mrb[0].mxu0
    %1378 = vmatprep.mubr.f32.mxu0 0.0
    %v1379 = vand.u32 %v1235, 4294901760
    %v1380 = vsub.f32 %v1235, %v1379
    %v1381 = vand.u32 %v1380, 4294901760
    %v1382 = vsub.f32 %v1380, %v1381
    %v1383 = vand.u32 %v1382, 4294901760
    %1384 = vmatmul.mubr.f32.gmra.mrb[0].mxu0 %v1383
    %v1385 = vpop.f32.mrb[0].mxu0
    %v1386 = vadd.f32 %v1153, %v1385
    %v1387 = vpop.f32.mrb[0].mxu0
    %1388 = vmatprep.mubr.f32.mxu0 0.0
    %v1389 = vand.u32 %v1238, 4294901760
    %v1390 = vsub.f32 %v1238, %v1389
    %v1391 = vand.u32 %v1390, 4294901760
    %v1392 = vsub.f32 %v1390, %v1391
    %v1393 = vand.u32 %v1392, 4294901760
    %1394 = vmatmul.mubr.f32.gmra.mrb[0].mxu0 %v1393
    %v1395 = vpop.f32.mrb[0].mxu0
    %v1396 = vadd.f32 %v1159, %v1395
    %v1397 = vpop.f32.mrb[0].mxu0
    %1398 = vmatprep.mubr.f32.mxu0 0.0
    %v1399 = vand.u32 %v1241, 4294901760
    %v1400 = vsub.f32 %v1241, %v1399
    %v1401 = vand.u32 %v1400, 4294901760
    %v1402 = vsub.f32 %v1400, %v1401
    %v1403 = vand.u32 %v1402, 4294901760
    %1404 = vmatmul.mubr.f32.gmra.mrb[0].mxu0 %v1403
    %v1405 = vpop.f32.mrb[0].mxu0
    %v1406 = vadd.f32 %v1165, %v1405
    %v1407 = vpop.f32.mrb[0].mxu0
    %1408 = vmatprep.mubr.f32.mxu0 0.0
    %v1409 = vand.u32 %v1244, 4294901760
    %v1410 = vsub.f32 %v1244, %v1409
    %v1411 = vand.u32 %v1410, 4294901760
    %v1412 = vsub.f32 %v1410, %v1411
    %v1413 = vand.u32 %v1412, 4294901760
    %1414 = vmatmul.mubr.f32.gmra.mrb[0].mxu0 %v1413
    %v1415 = vpop.f32.mrb[0].mxu0
    %v1416 = vadd.f32 %v1171, %v1415
    %v1417 = vpop.f32.mrb[0].mxu0
    %1418 = vmatprep.mubr.f32.mxu0 0.0
    %v1419 = vand.u32 %v1247, 4294901760
    %v1420 = vsub.f32 %v1247, %v1419
    %v1421 = vand.u32 %v1420, 4294901760
    %v1422 = vsub.f32 %v1420, %v1421
    %v1423 = vand.u32 %v1422, 4294901760
    %1424 = vmatmul.mubr.f32.gmra.mrb[0].mxu0 %v1423
    %v1425 = vpop.f32.mrb[0].mxu0
    %v1426 = vadd.f32 %v1177, %v1425
    %v1427 = vpop.f32.mrb[0].mxu0
    %1428 = vmatprep.mubr.f32.mxu0 0.0
    %v1429 = vand.u32 %v1250, 4294901760
    %v1430 = vsub.f32 %v1250, %v1429
    %v1431 = vand.u32 %v1430, 4294901760
    %v1432 = vsub.f32 %v1430, %v1431
    %v1433 = vand.u32 %v1432, 4294901760
    %1434 = vmatmul.mubr.f32.gmra.mrb[0].mxu0 %v1433
    %v1435 = vpop.f32.mrb[0].mxu0
    %v1436 = vadd.f32 %v1183, %v1435
    %v1437 = vpop.f32.mrb[0].mxu0
    %1438 = vmatprep.mubr.f32.mxu0 0.0
    %v1439 = vand.u32 %v1253, 4294901760
    %v1440 = vsub.f32 %v1253, %v1439
    %v1441 = vand.u32 %v1440, 4294901760
    %v1442 = vsub.f32 %v1440, %v1441
    %v1443 = vand.u32 %v1442, 4294901760
    %1444 = vmatmul.mubr.f32.gmra.mrb[0].mxu0 %v1443
    %v1445 = vpop.f32.mrb[0].mxu0
    %v1446 = vadd.f32 %v1189, %v1445
    %v1447 = vpop.f32.mrb[0].mxu0
    %1448 = vmatprep.mubr.f32.mxu0 0.0
    %v1449 = vand.u32 %v1256, 4294901760
    %v1450 = vsub.f32 %v1256, %v1449
    %v1451 = vand.u32 %v1450, 4294901760
    %v1452 = vsub.f32 %v1450, %v1451
    %v1453 = vand.u32 %v1452, 4294901760
    %1454 = vmatmul.mubr.f32.gmra.mrb[0].mxu0 %v1453
    %v1455 = vpop.f32.mrb[0].mxu0
    %v1456 = vadd.f32 %v1195, %v1455
    %v1457 = vpop.f32.mrb[0].mxu0
    %1458 = vmatprep.mubr.f32.mxu0 0.0
    %v1459 = vand.u32 %v1259, 4294901760
    %v1460 = vsub.f32 %v1259, %v1459
    %v1461 = vand.u32 %v1460, 4294901760
    %v1462 = vsub.f32 %v1460, %v1461
    %v1463 = vand.u32 %v1462, 4294901760
    %1464 = vmatmul.mubr.f32.gmra.mrb[0].mxu0 %v1463
    %v1465 = vpop.f32.mrb[0].mxu0
    %v1466 = vadd.f32 %v1201, %v1465
    %v1467 = vpop.f32.mrb[0].mxu0
    %1468 = vmatprep.mubr.f32.mxu0 0.0
    %v1469 = vand.u32 %v1262, 4294901760
    %v1470 = vsub.f32 %v1262, %v1469
    %v1471 = vand.u32 %v1470, 4294901760
    %v1472 = vsub.f32 %v1470, %v1471
    %v1473 = vand.u32 %v1472, 4294901760
    %1474 = vmatmul.mubr.f32.gmra.mrb[0].mxu0 %v1473
    %v1475 = vpop.f32.mrb[0].mxu0
    %v1476 = vadd.f32 %v1207, %v1475
    %v1477 = vpop.f32.mrb[0].mxu0
    %1478 = vmatprep.mubr.f32.mxu0 0.0
    %v1479 = vand.u32 %v1265, 4294901760
    %v1480 = vsub.f32 %v1265, %v1479
    %v1481 = vand.u32 %v1480, 4294901760
    %v1482 = vsub.f32 %v1480, %v1481
    %v1483 = vand.u32 %v1482, 4294901760
    %1484 = vmatmul.mubr.f32.gmra.mrb[0].mxu0 %v1483
    %v1485 = vpop.f32.mrb[0].mxu0
    %v1486 = vadd.f32 %v1213, %v1485
    %v1487 = vpop.f32.mrb[0].mxu0
    %1488 = vmatprep.mubr.f32.mxu0 0.0
    %v1489 = vand.u32 %v1268, 4294901760
    %v1490 = vsub.f32 %v1268, %v1489
    %v1491 = vand.u32 %v1490, 4294901760
    %v1492 = vsub.f32 %v1490, %v1491
    %v1493 = vand.u32 %v1492, 4294901760
    %1494 = vmatmul.mubr.f32.gmra.mrb[0].mxu0 %v1493
    %v1495 = vpop.f32.mrb[0].mxu0
    %v1496 = vadd.f32 %v1219, %v1495
    %v1497 = vpop.f32.mrb[0].mxu0
    %1498 = vdwg.mxu0
    %1499 = vmatprep.subr.mxu0 0.0
    %v1500 = vand.u32 %v1271, 4294901760
    %v1501 = vsub.f32 %v1271, %v1500
    %v1502 = vand.u32 %v1501, 4294901760
    %v1503 = vsub.f32 %v1501, %v1502
    %v1504 = vand.u32 %v1503, 4294901760
    %1505 = vmatpush1.msra.mxu0 %v1504
    %1506 = vmatprep.subr.mxu0 0.0
    %1507 = vmatpush1.msra.mxu0 0.0
    %1508 = vmatprep.subr.mxu0 0.0
    %1509 = vmatpush1.msra.mxu0 0.0
    %1510 = vmatprep.subr.mxu0 0.0
    %1511 = vmatpush1.msra.mxu0 0.0
    %1512 = vmatprep.subr.mxu0 0.0
    %1513 = vmatpush1.msra.mxu0 0.0
    %1514 = vmatprep.subr.mxu0 0.0
    %1515 = vmatpush1.msra.mxu0 0.0
    %1516 = vmatprep.subr.mxu0 0.0
    %1517 = vmatpush1.msra.mxu0 0.0
    %1518 = vmatprep.subr.mxu0 0.0
    %1519 = vmatpush1.msra.mxu0 0.0
    %1520 = vmatprep.subr.mxu0 0.0
    %1521 = vmatpush1.msra.mxu0 0.0
    %1522 = vmatprep.subr.mxu0 0.0
    %1523 = vmatpush1.msra.mxu0 0.0
    %1524 = vmatprep.subr.mxu0 0.0
    %1525 = vmatpush1.msra.mxu0 0.0
    %1526 = vmatprep.subr.mxu0 0.0
    %1527 = vmatpush1.msra.mxu0 0.0
    %1528 = vmatprep.subr.mxu0 0.0
    %1529 = vmatpush1.msra.mxu0 0.0
    %1530 = vmatprep.subr.mxu0 0.0
    %1531 = vmatpush1.msra.mxu0 0.0
    %1532 = vmatprep.subr.mxu0 0.0
    %1533 = vmatpush1.msra.mxu0 0.0
    %1534 = vmatprep.subr.mxu0 0.0
    %1535 = vmatpush1.msra.mxu0 0.0
    %1536 = vmatprep.subr.mxu0 0.0
    %1537 = vmatpush1.msra.mxu0 0.0
    %1538 = vmatprep.subr.mxu0 0.0
    %1539 = vmatpush1.msra.mxu0 0.0
    %1540 = vmatprep.subr.mxu0 0.0
    %1541 = vmatpush1.msra.mxu0 0.0
    %1542 = vmatprep.subr.mxu0 0.0
    %1543 = vmatpush1.msra.mxu0 0.0
    %1544 = vmatprep.subr.mxu0 0.0
    %1545 = vmatpush1.msra.mxu0 0.0
    %1546 = vmatprep.subr.mxu0 0.0
    %1547 = vmatpush1.msra.mxu0 0.0
    %1548 = vmatprep.subr.mxu0 0.0
    %1549 = vmatpush1.msra.mxu0 0.0
    %1550 = vmatprep.subr.mxu0 0.0
    %1551 = vmatpush1.msra.mxu0 0.0
    %1552 = vmatprep.subr.mxu0 0.0
    %1553 = vmatpush1.msra.mxu0 0.0
    %1554 = vmatprep.subr.mxu0 0.0
    %1555 = vmatpush1.msra.mxu0 0.0
    %1556 = vmatprep.subr.mxu0 0.0
    %1557 = vmatpush1.msra.mxu0 0.0
    %1558 = vmatprep.subr.mxu0 0.0
    %1559 = vmatpush1.msra.mxu0 0.0
    %1560 = vmatprep.subr.mxu0 0.0
    %1561 = vmatpush1.msra.mxu0 0.0
    %1562 = vmatprep.subr.mxu0 0.0
    %1563 = vmatpush1.msra.mxu0 0.0
    %1564 = vmatprep.subr.mxu0 0.0
    %1565 = vmatpush1.msra.mxu0 0.0
    %1566 = vmatprep.subr.mxu0 0.0
    %1567 = vmatpush1.msra.mxu0 0.0
    %1568 = vmatprep.mubr.f32.mxu0 0.0
    %v1569 = vand.u32 %v1223, 4294901760
    %1570 = vmatmul.mubr.f32.gmra.mrb[0].mxu0 %v1569
    %v1571 = vpop.f32.mrb[0].mxu0
    %v1572 = vadd.f32 %v1346, %v1571
    %v1573 = vpop.f32.mrb[0].mxu0
    %1574 = vmatprep.mubr.f32.mxu0 0.0
    %v1575 = vand.u32 %v1226, 4294901760
    %1576 = vmatmul.mubr.f32.gmra.mrb[0].mxu0 %v1575
    %v1577 = vpop.f32.mrb[0].mxu0
    %v1578 = vadd.f32 %v1356, %v1577
    %v1579 = vpop.f32.mrb[0].mxu0
    %1580 = vmatprep.mubr.f32.mxu0 0.0
    %v1581 = vand.u32 %v1229, 4294901760
    %1582 = vmatmul.mubr.f32.gmra.mrb[0].mxu0 %v1581
    %v1583 = vpop.f32.mrb[0].mxu0
    %v1584 = vadd.f32 %v1366, %v1583
    %v1585 = vpop.f32.mrb[0].mxu0
    %1586 = vmatprep.mubr.f32.mxu0 0.0
    %v1587 = vand.u32 %v1232, 4294901760
    %1588 = vmatmul.mubr.f32.gmra.mrb[0].mxu0 %v1587
    %v1589 = vpop.f32.mrb[0].mxu0
    %v1590 = vadd.f32 %v1376, %v1589
    %v1591 = vpop.f32.mrb[0].mxu0
    %1592 = vmatprep.mubr.f32.mxu0 0.0
    %v1593 = vand.u32 %v1235, 4294901760
    %1594 = vmatmul.mubr.f32.gmra.mrb[0].mxu0 %v1593
    %v1595 = vpop.f32.mrb[0].mxu0
    %v1596 = vadd.f32 %v1386, %v1595
    %v1597 = vpop.f32.mrb[0].mxu0
    %1598 = vmatprep.mubr.f32.mxu0 0.0
    %v1599 = vand.u32 %v1238, 4294901760
    %1600 = vmatmul.mubr.f32.gmra.mrb[0].mxu0 %v1599
    %v1601 = vpop.f32.mrb[0].mxu0
    %v1602 = vadd.f32 %v1396, %v1601
    %v1603 = vpop.f32.mrb[0].mxu0
    %1604 = vmatprep.mubr.f32.mxu0 0.0
    %v1605 = vand.u32 %v1241, 4294901760
    %1606 = vmatmul.mubr.f32.gmra.mrb[0].mxu0 %v1605
    %v1607 = vpop.f32.mrb[0].mxu0
    %v1608 = vadd.f32 %v1406, %v1607
    %v1609 = vpop.f32.mrb[0].mxu0
    %1610 = vmatprep.mubr.f32.mxu0 0.0
    %v1611 = vand.u32 %v1244, 4294901760
    %1612 = vmatmul.mubr.f32.gmra.mrb[0].mxu0 %v1611
    %v1613 = vpop.f32.mrb[0].mxu0
    %v1614 = vadd.f32 %v1416, %v1613
    %v1615 = vpop.f32.mrb[0].mxu0
    %1616 = vmatprep.mubr.f32.mxu0 0.0
    %v1617 = vand.u32 %v1247, 4294901760
    %1618 = vmatmul.mubr.f32.gmra.mrb[0].mxu0 %v1617
    %v1619 = vpop.f32.mrb[0].mxu0
    %v1620 = vadd.f32 %v1426, %v1619
    %v1621 = vpop.f32.mrb[0].mxu0
    %1622 = vmatprep.mubr.f32.mxu0 0.0
    %v1623 = vand.u32 %v1250, 4294901760
    %1624 = vmatmul.mubr.f32.gmra.mrb[0].mxu0 %v1623
    %v1625 = vpop.f32.mrb[0].mxu0
    %v1626 = vadd.f32 %v1436, %v1625
    %v1627 = vpop.f32.mrb[0].mxu0
    %1628 = vmatprep.mubr.f32.mxu0 0.0
    %v1629 = vand.u32 %v1253, 4294901760
    %1630 = vmatmul.mubr.f32.gmra.mrb[0].mxu0 %v1629
    %v1631 = vpop.f32.mrb[0].mxu0
    %v1632 = vadd.f32 %v1446, %v1631
    %v1633 = vpop.f32.mrb[0].mxu0
    %1634 = vmatprep.mubr.f32.mxu0 0.0
    %v1635 = vand.u32 %v1256, 4294901760
    %1636 = vmatmul.mubr.f32.gmra.mrb[0].mxu0 %v1635
    %v1637 = vpop.f32.mrb[0].mxu0
    %v1638 = vadd.f32 %v1456, %v1637
    %v1639 = vpop.f32.mrb[0].mxu0
    %1640 = vmatprep.mubr.f32.mxu0 0.0
    %v1641 = vand.u32 %v1259, 4294901760
    %1642 = vmatmul.mubr.f32.gmra.mrb[0].mxu0 %v1641
    %v1643 = vpop.f32.mrb[0].mxu0
    %v1644 = vadd.f32 %v1466, %v1643
    %v1645 = vpop.f32.mrb[0].mxu0
    %1646 = vmatprep.mubr.f32.mxu0 0.0
    %v1647 = vand.u32 %v1262, 4294901760
    %1648 = vmatmul.mubr.f32.gmra.mrb[0].mxu0 %v1647
    %v1649 = vpop.f32.mrb[0].mxu0
    %v1650 = vadd.f32 %v1476, %v1649
    %v1651 = vpop.f32.mrb[0].mxu0
    %1652 = vmatprep.mubr.f32.mxu0 0.0
    %v1653 = vand.u32 %v1265, 4294901760
    %1654 = vmatmul.mubr.f32.gmra.mrb[0].mxu0 %v1653
    %v1655 = vpop.f32.mrb[0].mxu0
    %v1656 = vadd.f32 %v1486, %v1655
    %v1657 = vpop.f32.mrb[0].mxu0
    %1658 = vmatprep.mubr.f32.mxu0 0.0
    %v1659 = vand.u32 %v1268, 4294901760
    %1660 = vmatmul.mubr.f32.gmra.mrb[0].mxu0 %v1659
    %v1661 = vpop.f32.mrb[0].mxu0
    %v1662 = vadd.f32 %v1496, %v1661
    %v1663 = vpop.f32.mrb[0].mxu0
    %1664 = vdwg.mxu0
    %1665 = vmatprep.subr.mxu0 0.0
    %v1666 = vand.u32 %v1271, 4294901760
    %v1667 = vsub.f32 %v1271, %v1666
    %1668 = vmatpush1.msra.mxu0 %v1667
    %1669 = vmatprep.subr.mxu0 0.0
    %1670 = vmatpush1.msra.mxu0 0.0
    %1671 = vmatprep.subr.mxu0 0.0
    %1672 = vmatpush1.msra.mxu0 0.0
    %1673 = vmatprep.subr.mxu0 0.0
    %1674 = vmatpush1.msra.mxu0 0.0
    %1675 = vmatprep.subr.mxu0 0.0
    %1676 = vmatpush1.msra.mxu0 0.0
    %1677 = vmatprep.subr.mxu0 0.0
    %1678 = vmatpush1.msra.mxu0 0.0
    %1679 = vmatprep.subr.mxu0 0.0
    %1680 = vmatpush1.msra.mxu0 0.0
    %1681 = vmatprep.subr.mxu0 0.0
    %1682 = vmatpush1.msra.mxu0 0.0
    %1683 = vmatprep.subr.mxu0 0.0
    %1684 = vmatpush1.msra.mxu0 0.0
    %1685 = vmatprep.subr.mxu0 0.0
    %1686 = vmatpush1.msra.mxu0 0.0
    %1687 = vmatprep.subr.mxu0 0.0
    %1688 = vmatpush1.msra.mxu0 0.0
    %1689 = vmatprep.subr.mxu0 0.0
    %1690 = vmatpush1.msra.mxu0 0.0
    %1691 = vmatprep.subr.mxu0 0.0
    %1692 = vmatpush1.msra.mxu0 0.0
    %1693 = vmatprep.subr.mxu0 0.0
    %1694 = vmatpush1.msra.mxu0 0.0
    %1695 = vmatprep.subr.mxu0 0.0
    %1696 = vmatpush1.msra.mxu0 0.0
    %1697 = vmatprep.subr.mxu0 0.0
    %1698 = vmatpush1.msra.mxu0 0.0
    %1699 = vmatprep.subr.mxu0 0.0
    %1700 = vmatpush1.msra.mxu0 0.0
    %1701 = vmatprep.subr.mxu0 0.0
    %1702 = vmatpush1.msra.mxu0 0.0
    %1703 = vmatprep.subr.mxu0 0.0
    %1704 = vmatpush1.msra.mxu0 0.0
    %1705 = vmatprep.subr.mxu0 0.0
    %1706 = vmatpush1.msra.mxu0 0.0
    %1707 = vmatprep.subr.mxu0 0.0
    %1708 = vmatpush1.msra.mxu0 0.0
    %1709 = vmatprep.subr.mxu0 0.0
    %1710 = vmatpush1.msra.mxu0 0.0
    %1711 = vmatprep.subr.mxu0 0.0
    %1712 = vmatpush1.msra.mxu0 0.0
    %1713 = vmatprep.subr.mxu0 0.0
    %1714 = vmatpush1.msra.mxu0 0.0
    %1715 = vmatprep.subr.mxu0 0.0
    %1716 = vmatpush1.msra.mxu0 0.0
    %1717 = vmatprep.subr.mxu0 0.0
    %1718 = vmatpush1.msra.mxu0 0.0
    %1719 = vmatprep.subr.mxu0 0.0
    %1720 = vmatpush1.msra.mxu0 0.0
    %1721 = vmatprep.subr.mxu0 0.0
    %1722 = vmatpush1.msra.mxu0 0.0
    %1723 = vmatprep.subr.mxu0 0.0
    %1724 = vmatpush1.msra.mxu0 0.0
    %1725 = vmatprep.subr.mxu0 0.0
    %1726 = vmatpush1.msra.mxu0 0.0
    %1727 = vmatprep.subr.mxu0 0.0
    %1728 = vmatpush1.msra.mxu0 0.0
    %1729 = vmatprep.subr.mxu0 0.0
    %1730 = vmatpush1.msra.mxu0 0.0
    %1731 = vmatprep.mubr.f32.mxu0 0.0
    %v1732 = vand.u32 %v1223, 4294901760
    %v1733 = vsub.f32 %v1223, %v1732
    %1734 = vmatmul.mubr.f32.gmra.mrb[0].mxu0 %v1733
    %v1735 = vpop.f32.mrb[0].mxu0
    %v1736 = vadd.f32 %v1572, %v1735
    %v1737 = vpop.f32.mrb[0].mxu0
    %1738 = vmatprep.mubr.f32.mxu0 0.0
    %v1739 = vand.u32 %v1226, 4294901760
    %v1740 = vsub.f32 %v1226, %v1739
    %1741 = vmatmul.mubr.f32.gmra.mrb[0].mxu0 %v1740
    %v1742 = vpop.f32.mrb[0].mxu0
    %v1743 = vadd.f32 %v1578, %v1742
    %v1744 = vpop.f32.mrb[0].mxu0
    %1745 = vmatprep.mubr.f32.mxu0 0.0
    %v1746 = vand.u32 %v1229, 4294901760
    %v1747 = vsub.f32 %v1229, %v1746
    %1748 = vmatmul.mubr.f32.gmra.mrb[0].mxu0 %v1747
    %v1749 = vpop.f32.mrb[0].mxu0
    %v1750 = vadd.f32 %v1584, %v1749
    %v1751 = vpop.f32.mrb[0].mxu0
    %1752 = vmatprep.mubr.f32.mxu0 0.0
    %v1753 = vand.u32 %v1232, 4294901760
    %v1754 = vsub.f32 %v1232, %v1753
    %1755 = vmatmul.mubr.f32.gmra.mrb[0].mxu0 %v1754
    %v1756 = vpop.f32.mrb[0].mxu0
    %v1757 = vadd.f32 %v1590, %v1756
    %v1758 = vpop.f32.mrb[0].mxu0
    %1759 = vmatprep.mubr.f32.mxu0 0.0
    %v1760 = vand.u32 %v1235, 4294901760
    %v1761 = vsub.f32 %v1235, %v1760
    %1762 = vmatmul.mubr.f32.gmra.mrb[0].mxu0 %v1761
    %v1763 = vpop.f32.mrb[0].mxu0
    %v1764 = vadd.f32 %v1596, %v1763
    %v1765 = vpop.f32.mrb[0].mxu0
    %1766 = vmatprep.mubr.f32.mxu0 0.0
    %v1767 = vand.u32 %v1238, 4294901760
    %v1768 = vsub.f32 %v1238, %v1767
    %1769 = vmatmul.mubr.f32.gmra.mrb[0].mxu0 %v1768
    %v1770 = vpop.f32.mrb[0].mxu0
    %v1771 = vadd.f32 %v1602, %v1770
    %v1772 = vpop.f32.mrb[0].mxu0
    %1773 = vmatprep.mubr.f32.mxu0 0.0
    %v1774 = vand.u32 %v1241, 4294901760
    %v1775 = vsub.f32 %v1241, %v1774
    %1776 = vmatmul.mubr.f32.gmra.mrb[0].mxu0 %v1775
    %v1777 = vpop.f32.mrb[0].mxu0
    %v1778 = vadd.f32 %v1608, %v1777
    %v1779 = vpop.f32.mrb[0].mxu0
    %1780 = vmatprep.mubr.f32.mxu0 0.0
    %v1781 = vand.u32 %v1244, 4294901760
    %v1782 = vsub.f32 %v1244, %v1781
    %1783 = vmatmul.mubr.f32.gmra.mrb[0].mxu0 %v1782
    %v1784 = vpop.f32.mrb[0].mxu0
    %v1785 = vadd.f32 %v1614, %v1784
    %v1786 = vpop.f32.mrb[0].mxu0
    %1787 = vmatprep.mubr.f32.mxu0 0.0
    %v1788 = vand.u32 %v1247, 4294901760
    %v1789 = vsub.f32 %v1247, %v1788
    %1790 = vmatmul.mubr.f32.gmra.mrb[0].mxu0 %v1789
    %v1791 = vpop.f32.mrb[0].mxu0
    %v1792 = vadd.f32 %v1620, %v1791
    %v1793 = vpop.f32.mrb[0].mxu0
    %1794 = vmatprep.mubr.f32.mxu0 0.0
    %v1795 = vand.u32 %v1250, 4294901760
    %v1796 = vsub.f32 %v1250, %v1795
    %1797 = vmatmul.mubr.f32.gmra.mrb[0].mxu0 %v1796
    %v1798 = vpop.f32.mrb[0].mxu0
    %v1799 = vadd.f32 %v1626, %v1798
    %v1800 = vpop.f32.mrb[0].mxu0
    %1801 = vmatprep.mubr.f32.mxu0 0.0
    %v1802 = vand.u32 %v1253, 4294901760
    %v1803 = vsub.f32 %v1253, %v1802
    %1804 = vmatmul.mubr.f32.gmra.mrb[0].mxu0 %v1803
    %v1805 = vpop.f32.mrb[0].mxu0
    %v1806 = vadd.f32 %v1632, %v1805
    %v1807 = vpop.f32.mrb[0].mxu0
    %1808 = vmatprep.mubr.f32.mxu0 0.0
    %v1809 = vand.u32 %v1256, 4294901760
    %v1810 = vsub.f32 %v1256, %v1809
    %1811 = vmatmul.mubr.f32.gmra.mrb[0].mxu0 %v1810
    %v1812 = vpop.f32.mrb[0].mxu0
    %v1813 = vadd.f32 %v1638, %v1812
    %v1814 = vpop.f32.mrb[0].mxu0
    %1815 = vmatprep.mubr.f32.mxu0 0.0
    %v1816 = vand.u32 %v1259, 4294901760
    %v1817 = vsub.f32 %v1259, %v1816
    %1818 = vmatmul.mubr.f32.gmra.mrb[0].mxu0 %v1817
    %v1819 = vpop.f32.mrb[0].mxu0
    %v1820 = vadd.f32 %v1644, %v1819
    %v1821 = vpop.f32.mrb[0].mxu0
    %1822 = vmatprep.mubr.f32.mxu0 0.0
    %v1823 = vand.u32 %v1262, 4294901760
    %v1824 = vsub.f32 %v1262, %v1823
    %1825 = vmatmul.mubr.f32.gmra.mrb[0].mxu0 %v1824
    %v1826 = vpop.f32.mrb[0].mxu0
    %v1827 = vadd.f32 %v1650, %v1826
    %v1828 = vpop.f32.mrb[0].mxu0
    %1829 = vmatprep.mubr.f32.mxu0 0.0
    %v1830 = vand.u32 %v1265, 4294901760
    %v1831 = vsub.f32 %v1265, %v1830
    %1832 = vmatmul.mubr.f32.gmra.mrb[0].mxu0 %v1831
    %v1833 = vpop.f32.mrb[0].mxu0
    %v1834 = vadd.f32 %v1656, %v1833
    %v1835 = vpop.f32.mrb[0].mxu0
    %1836 = vmatprep.mubr.f32.mxu0 0.0
    %v1837 = vand.u32 %v1268, 4294901760
    %v1838 = vsub.f32 %v1268, %v1837
    %1839 = vmatmul.mubr.f32.gmra.mrb[0].mxu0 %v1838
    %v1840 = vpop.f32.mrb[0].mxu0
    %v1841 = vadd.f32 %v1662, %v1840
    %v1842 = vpop.f32.mrb[0].mxu0
    %1843 = vdwg.mxu0
    %1844 = vmatprep.subr.mxu0 0.0
    %v1845 = vand.u32 %v1271, 4294901760
    %1846 = vmatpush1.msra.mxu0 %v1845
    %1847 = vmatprep.subr.mxu0 0.0
    %1848 = vmatpush1.msra.mxu0 0.0
    %1849 = vmatprep.subr.mxu0 0.0
    %1850 = vmatpush1.msra.mxu0 0.0
    %1851 = vmatprep.subr.mxu0 0.0
    %1852 = vmatpush1.msra.mxu0 0.0
    %1853 = vmatprep.subr.mxu0 0.0
    %1854 = vmatpush1.msra.mxu0 0.0
    %1855 = vmatprep.subr.mxu0 0.0
    %1856 = vmatpush1.msra.mxu0 0.0
    %1857 = vmatprep.subr.mxu0 0.0
    %1858 = vmatpush1.msra.mxu0 0.0
    %1859 = vmatprep.subr.mxu0 0.0
    %1860 = vmatpush1.msra.mxu0 0.0
    %1861 = vmatprep.subr.mxu0 0.0
    %1862 = vmatpush1.msra.mxu0 0.0
    %1863 = vmatprep.subr.mxu0 0.0
    %1864 = vmatpush1.msra.mxu0 0.0
    %1865 = vmatprep.subr.mxu0 0.0
    %1866 = vmatpush1.msra.mxu0 0.0
    %1867 = vmatprep.subr.mxu0 0.0
    %1868 = vmatpush1.msra.mxu0 0.0
    %1869 = vmatprep.subr.mxu0 0.0
    %1870 = vmatpush1.msra.mxu0 0.0
    %1871 = vmatprep.subr.mxu0 0.0
    %1872 = vmatpush1.msra.mxu0 0.0
    %1873 = vmatprep.subr.mxu0 0.0
    %1874 = vmatpush1.msra.mxu0 0.0
    %1875 = vmatprep.subr.mxu0 0.0
    %1876 = vmatpush1.msra.mxu0 0.0
    %1877 = vmatprep.subr.mxu0 0.0
    %1878 = vmatpush1.msra.mxu0 0.0
    %1879 = vmatprep.subr.mxu0 0.0
    %1880 = vmatpush1.msra.mxu0 0.0
    %1881 = vmatprep.subr.mxu0 0.0
    %1882 = vmatpush1.msra.mxu0 0.0
    %1883 = vmatprep.subr.mxu0 0.0
    %1884 = vmatpush1.msra.mxu0 0.0
    %1885 = vmatprep.subr.mxu0 0.0
    %1886 = vmatpush1.msra.mxu0 0.0
    %1887 = vmatprep.subr.mxu0 0.0
    %1888 = vmatpush1.msra.mxu0 0.0
    %1889 = vmatprep.subr.mxu0 0.0
    %1890 = vmatpush1.msra.mxu0 0.0
    %1891 = vmatprep.subr.mxu0 0.0
    %1892 = vmatpush1.msra.mxu0 0.0
    %1893 = vmatprep.subr.mxu0 0.0
    %1894 = vmatpush1.msra.mxu0 0.0
    %1895 = vmatprep.subr.mxu0 0.0
    %1896 = vmatpush1.msra.mxu0 0.0
    %1897 = vmatprep.subr.mxu0 0.0
    %1898 = vmatpush1.msra.mxu0 0.0
    %1899 = vmatprep.subr.mxu0 0.0
    %1900 = vmatpush1.msra.mxu0 0.0
    %1901 = vmatprep.subr.mxu0 0.0
    %1902 = vmatpush1.msra.mxu0 0.0
    %1903 = vmatprep.subr.mxu0 0.0
    %1904 = vmatpush1.msra.mxu0 0.0
    %1905 = vmatprep.subr.mxu0 0.0
    %1906 = vmatpush1.msra.mxu0 0.0
    %1907 = vmatprep.subr.mxu0 0.0
    %1908 = vmatpush1.msra.mxu0 0.0
    %1909 = vmatprep.mubr.f32.mxu0 0.0
    %v1910 = vand.u32 %v1223, 4294901760
    %v1911 = vsub.f32 %v1223, %v1910
    %v1912 = vand.u32 %v1911, 4294901760
    %1913 = vmatmul.mubr.f32.gmra.mrb[0].mxu0 %v1912
    %v1914 = vpop.f32.mrb[0].mxu0
    %v1915 = vadd.f32 %v1736, %v1914
    %v1916 = vpop.f32.mrb[0].mxu0
    %1917 = vmatprep.mubr.f32.mxu0 0.0
    %v1918 = vand.u32 %v1226, 4294901760
    %v1919 = vsub.f32 %v1226, %v1918
    %v1920 = vand.u32 %v1919, 4294901760
    %1921 = vmatmul.mubr.f32.gmra.mrb[0].mxu0 %v1920
    %v1922 = vpop.f32.mrb[0].mxu0
    %v1923 = vadd.f32 %v1743, %v1922
    %v1924 = vpop.f32.mrb[0].mxu0
    %1925 = vmatprep.mubr.f32.mxu0 0.0
    %v1926 = vand.u32 %v1229, 4294901760
    %v1927 = vsub.f32 %v1229, %v1926
    %v1928 = vand.u32 %v1927, 4294901760
    %1929 = vmatmul.mubr.f32.gmra.mrb[0].mxu0 %v1928
    %v1930 = vpop.f32.mrb[0].mxu0
    %v1931 = vadd.f32 %v1750, %v1930
    %v1932 = vpop.f32.mrb[0].mxu0
    %1933 = vmatprep.mubr.f32.mxu0 0.0
    %v1934 = vand.u32 %v1232, 4294901760
    %v1935 = vsub.f32 %v1232, %v1934
    %v1936 = vand.u32 %v1935, 4294901760
    %1937 = vmatmul.mubr.f32.gmra.mrb[0].mxu0 %v1936
    %v1938 = vpop.f32.mrb[0].mxu0
    %v1939 = vadd.f32 %v1757, %v1938
    %v1940 = vpop.f32.mrb[0].mxu0
    %1941 = vmatprep.mubr.f32.mxu0 0.0
    %v1942 = vand.u32 %v1235, 4294901760
    %v1943 = vsub.f32 %v1235, %v1942
    %v1944 = vand.u32 %v1943, 4294901760
    %1945 = vmatmul.mubr.f32.gmra.mrb[0].mxu0 %v1944
    %v1946 = vpop.f32.mrb[0].mxu0
    %v1947 = vadd.f32 %v1764, %v1946
    %v1948 = vpop.f32.mrb[0].mxu0
    %1949 = vmatprep.mubr.f32.mxu0 0.0
    %v1950 = vand.u32 %v1238, 4294901760
    %v1951 = vsub.f32 %v1238, %v1950
    %v1952 = vand.u32 %v1951, 4294901760
    %1953 = vmatmul.mubr.f32.gmra.mrb[0].mxu0 %v1952
    %v1954 = vpop.f32.mrb[0].mxu0
    %v1955 = vadd.f32 %v1771, %v1954
    %v1956 = vpop.f32.mrb[0].mxu0
    %1957 = vmatprep.mubr.f32.mxu0 0.0
    %v1958 = vand.u32 %v1241, 4294901760
    %v1959 = vsub.f32 %v1241, %v1958
    %v1960 = vand.u32 %v1959, 4294901760
    %1961 = vmatmul.mubr.f32.gmra.mrb[0].mxu0 %v1960
    %v1962 = vpop.f32.mrb[0].mxu0
    %v1963 = vadd.f32 %v1778, %v1962
    %v1964 = vpop.f32.mrb[0].mxu0
    %1965 = vmatprep.mubr.f32.mxu0 0.0
    %v1966 = vand.u32 %v1244, 4294901760
    %v1967 = vsub.f32 %v1244, %v1966
    %v1968 = vand.u32 %v1967, 4294901760
    %1969 = vmatmul.mubr.f32.gmra.mrb[0].mxu0 %v1968
    %v1970 = vpop.f32.mrb[0].mxu0
    %v1971 = vadd.f32 %v1785, %v1970
    %v1972 = vpop.f32.mrb[0].mxu0
    %1973 = vmatprep.mubr.f32.mxu0 0.0
    %v1974 = vand.u32 %v1247, 4294901760
    %v1975 = vsub.f32 %v1247, %v1974
    %v1976 = vand.u32 %v1975, 4294901760
    %1977 = vmatmul.mubr.f32.gmra.mrb[0].mxu0 %v1976
    %v1978 = vpop.f32.mrb[0].mxu0
    %v1979 = vadd.f32 %v1792, %v1978
    %v1980 = vpop.f32.mrb[0].mxu0
    %1981 = vmatprep.mubr.f32.mxu0 0.0
    %v1982 = vand.u32 %v1250, 4294901760
    %v1983 = vsub.f32 %v1250, %v1982
    %v1984 = vand.u32 %v1983, 4294901760
    %1985 = vmatmul.mubr.f32.gmra.mrb[0].mxu0 %v1984
    %v1986 = vpop.f32.mrb[0].mxu0
    %v1987 = vadd.f32 %v1799, %v1986
    %v1988 = vpop.f32.mrb[0].mxu0
    %1989 = vmatprep.mubr.f32.mxu0 0.0
    %v1990 = vand.u32 %v1253, 4294901760
    %v1991 = vsub.f32 %v1253, %v1990
    %v1992 = vand.u32 %v1991, 4294901760
    %1993 = vmatmul.mubr.f32.gmra.mrb[0].mxu0 %v1992
    %v1994 = vpop.f32.mrb[0].mxu0
    %v1995 = vadd.f32 %v1806, %v1994
    %v1996 = vpop.f32.mrb[0].mxu0
    %1997 = vmatprep.mubr.f32.mxu0 0.0
    %v1998 = vand.u32 %v1256, 4294901760
    %v1999 = vsub.f32 %v1256, %v1998
    %v2000 = vand.u32 %v1999, 4294901760
    %2001 = vmatmul.mubr.f32.gmra.mrb[0].mxu0 %v2000
    %v2002 = vpop.f32.mrb[0].mxu0
    %v2003 = vadd.f32 %v1813, %v2002
    %v2004 = vpop.f32.mrb[0].mxu0
    %2005 = vmatprep.mubr.f32.mxu0 0.0
    %v2006 = vand.u32 %v1259, 4294901760
    %v2007 = vsub.f32 %v1259, %v2006
    %v2008 = vand.u32 %v2007, 4294901760
    %2009 = vmatmul.mubr.f32.gmra.mrb[0].mxu0 %v2008
    %v2010 = vpop.f32.mrb[0].mxu0
    %v2011 = vadd.f32 %v1820, %v2010
    %v2012 = vpop.f32.mrb[0].mxu0
    %2013 = vmatprep.mubr.f32.mxu0 0.0
    %v2014 = vand.u32 %v1262, 4294901760
    %v2015 = vsub.f32 %v1262, %v2014
    %v2016 = vand.u32 %v2015, 4294901760
    %2017 = vmatmul.mubr.f32.gmra.mrb[0].mxu0 %v2016
    %v2018 = vpop.f32.mrb[0].mxu0
    %v2019 = vadd.f32 %v1827, %v2018
    %v2020 = vpop.f32.mrb[0].mxu0
    %2021 = vmatprep.mubr.f32.mxu0 0.0
    %v2022 = vand.u32 %v1265, 4294901760
    %v2023 = vsub.f32 %v1265, %v2022
    %v2024 = vand.u32 %v2023, 4294901760
    %2025 = vmatmul.mubr.f32.gmra.mrb[0].mxu0 %v2024
    %v2026 = vpop.f32.mrb[0].mxu0
    %v2027 = vadd.f32 %v1834, %v2026
    %v2028 = vpop.f32.mrb[0].mxu0
    %2029 = vmatprep.mubr.f32.mxu0 0.0
    %v2030 = vand.u32 %v1268, 4294901760
    %v2031 = vsub.f32 %v1268, %v2030
    %v2032 = vand.u32 %v2031, 4294901760
    %2033 = vmatmul.mubr.f32.gmra.mrb[0].mxu0 %v2032
    %v2034 = vpop.f32.mrb[0].mxu0
    %v2035 = vadd.f32 %v1841, %v2034
    %v2036 = vpop.f32.mrb[0].mxu0
    %2037 = vdwg.mxu0
    %2038 = vmatprep.subr.mxu0 0.0
    %v2039 = vand.u32 %v1271, 4294901760
    %v2040 = vsub.f32 %v1271, %v2039
    %v2041 = vand.u32 %v2040, 4294901760
    %2042 = vmatpush1.msra.mxu0 %v2041
    %2043 = vmatprep.subr.mxu0 0.0
    %2044 = vmatpush1.msra.mxu0 0.0
    %2045 = vmatprep.subr.mxu0 0.0
    %2046 = vmatpush1.msra.mxu0 0.0
    %2047 = vmatprep.subr.mxu0 0.0
    %2048 = vmatpush1.msra.mxu0 0.0
    %2049 = vmatprep.subr.mxu0 0.0
    %2050 = vmatpush1.msra.mxu0 0.0
    %2051 = vmatprep.subr.mxu0 0.0
    %2052 = vmatpush1.msra.mxu0 0.0
    %2053 = vmatprep.subr.mxu0 0.0
    %2054 = vmatpush1.msra.mxu0 0.0
    %2055 = vmatprep.subr.mxu0 0.0
    %2056 = vmatpush1.msra.mxu0 0.0
    %2057 = vmatprep.subr.mxu0 0.0
    %2058 = vmatpush1.msra.mxu0 0.0
    %2059 = vmatprep.subr.mxu0 0.0
    %2060 = vmatpush1.msra.mxu0 0.0
    %2061 = vmatprep.subr.mxu0 0.0
    %2062 = vmatpush1.msra.mxu0 0.0
    %2063 = vmatprep.subr.mxu0 0.0
    %2064 = vmatpush1.msra.mxu0 0.0
    %2065 = vmatprep.subr.mxu0 0.0
    %2066 = vmatpush1.msra.mxu0 0.0
    %2067 = vmatprep.subr.mxu0 0.0
    %2068 = vmatpush1.msra.mxu0 0.0
    %2069 = vmatprep.subr.mxu0 0.0
    %2070 = vmatpush1.msra.mxu0 0.0
    %2071 = vmatprep.subr.mxu0 0.0
    %2072 = vmatpush1.msra.mxu0 0.0
    %2073 = vmatprep.subr.mxu0 0.0
    %2074 = vmatpush1.msra.mxu0 0.0
    %2075 = vmatprep.subr.mxu0 0.0
    %2076 = vmatpush1.msra.mxu0 0.0
    %2077 = vmatprep.subr.mxu0 0.0
    %2078 = vmatpush1.msra.mxu0 0.0
    %2079 = vmatprep.subr.mxu0 0.0
    %2080 = vmatpush1.msra.mxu0 0.0
    %2081 = vmatprep.subr.mxu0 0.0
    %2082 = vmatpush1.msra.mxu0 0.0
    %2083 = vmatprep.subr.mxu0 0.0
    %2084 = vmatpush1.msra.mxu0 0.0
    %2085 = vmatprep.subr.mxu0 0.0
    %2086 = vmatpush1.msra.mxu0 0.0
    %2087 = vmatprep.subr.mxu0 0.0
    %2088 = vmatpush1.msra.mxu0 0.0
    %2089 = vmatprep.subr.mxu0 0.0
    %2090 = vmatpush1.msra.mxu0 0.0
    %2091 = vmatprep.subr.mxu0 0.0
    %2092 = vmatpush1.msra.mxu0 0.0
    %2093 = vmatprep.subr.mxu0 0.0
    %2094 = vmatpush1.msra.mxu0 0.0
    %2095 = vmatprep.subr.mxu0 0.0
    %2096 = vmatpush1.msra.mxu0 0.0
    %2097 = vmatprep.subr.mxu0 0.0
    %2098 = vmatpush1.msra.mxu0 0.0
    %2099 = vmatprep.subr.mxu0 0.0
    %2100 = vmatpush1.msra.mxu0 0.0
    %2101 = vmatprep.subr.mxu0 0.0
    %2102 = vmatpush1.msra.mxu0 0.0
    %2103 = vmatprep.subr.mxu0 0.0
    %2104 = vmatpush1.msra.mxu0 0.0
    %2105 = vmatprep.mubr.f32.mxu0 0.0
    %v2106 = vand.u32 %v1223, 4294901760
    %2107 = vmatmul.mubr.f32.gmra.mrb[0].mxu0 %v2106
    %v2108 = vpop.f32.mrb[0].mxu0
    %v2109 = vadd.f32 %v1915, %v2108
    %v2110 = vpop.f32.mrb[0].mxu0
    %2111 = vmatprep.mubr.f32.mxu0 0.0
    %v2112 = vand.u32 %v1226, 4294901760
    %2113 = vmatmul.mubr.f32.gmra.mrb[0].mxu0 %v2112
    %v2114 = vpop.f32.mrb[0].mxu0
    %v2115 = vadd.f32 %v1923, %v2114
    %v2116 = vpop.f32.mrb[0].mxu0
    %2117 = vmatprep.mubr.f32.mxu0 0.0
    %v2118 = vand.u32 %v1229, 4294901760
    %2119 = vmatmul.mubr.f32.gmra.mrb[0].mxu0 %v2118
    %v2120 = vpop.f32.mrb[0].mxu0
    %v2121 = vadd.f32 %v1931, %v2120
    %v2122 = vpop.f32.mrb[0].mxu0
    %2123 = vmatprep.mubr.f32.mxu0 0.0
    %v2124 = vand.u32 %v1232, 4294901760
    %2125 = vmatmul.mubr.f32.gmra.mrb[0].mxu0 %v2124
    %v2126 = vpop.f32.mrb[0].mxu0
    %v2127 = vadd.f32 %v1939, %v2126
    %v2128 = vpop.f32.mrb[0].mxu0
    %2129 = vmatprep.mubr.f32.mxu0 0.0
    %v2130 = vand.u32 %v1235, 4294901760
    %2131 = vmatmul.mubr.f32.gmra.mrb[0].mxu0 %v2130
    %v2132 = vpop.f32.mrb[0].mxu0
    %v2133 = vadd.f32 %v1947, %v2132
    %v2134 = vpop.f32.mrb[0].mxu0
    %2135 = vmatprep.mubr.f32.mxu0 0.0
    %v2136 = vand.u32 %v1238, 4294901760
    %2137 = vmatmul.mubr.f32.gmra.mrb[0].mxu0 %v2136
    %v2138 = vpop.f32.mrb[0].mxu0
    %v2139 = vadd.f32 %v1955, %v2138
    %v2140 = vpop.f32.mrb[0].mxu0
    %2141 = vmatprep.mubr.f32.mxu0 0.0
    %v2142 = vand.u32 %v1241, 4294901760
    %2143 = vmatmul.mubr.f32.gmra.mrb[0].mxu0 %v2142
    %v2144 = vpop.f32.mrb[0].mxu0
    %v2145 = vadd.f32 %v1963, %v2144
    %v2146 = vpop.f32.mrb[0].mxu0
    %2147 = vmatprep.mubr.f32.mxu0 0.0
    %v2148 = vand.u32 %v1244, 4294901760
    %2149 = vmatmul.mubr.f32.gmra.mrb[0].mxu0 %v2148
    %v2150 = vpop.f32.mrb[0].mxu0
    %v2151 = vadd.f32 %v1971, %v2150
    %v2152 = vpop.f32.mrb[0].mxu0
    %2153 = vmatprep.mubr.f32.mxu0 0.0
    %v2154 = vand.u32 %v1247, 4294901760
    %2155 = vmatmul.mubr.f32.gmra.mrb[0].mxu0 %v2154
    %v2156 = vpop.f32.mrb[0].mxu0
    %v2157 = vadd.f32 %v1979, %v2156
    %v2158 = vpop.f32.mrb[0].mxu0
    %2159 = vmatprep.mubr.f32.mxu0 0.0
    %v2160 = vand.u32 %v1250, 4294901760
    %2161 = vmatmul.mubr.f32.gmra.mrb[0].mxu0 %v2160
    %v2162 = vpop.f32.mrb[0].mxu0
    %v2163 = vadd.f32 %v1987, %v2162
    %v2164 = vpop.f32.mrb[0].mxu0
    %2165 = vmatprep.mubr.f32.mxu0 0.0
    %v2166 = vand.u32 %v1253, 4294901760
    %2167 = vmatmul.mubr.f32.gmra.mrb[0].mxu0 %v2166
    %v2168 = vpop.f32.mrb[0].mxu0
    %v2169 = vadd.f32 %v1995, %v2168
    %v2170 = vpop.f32.mrb[0].mxu0
    %2171 = vmatprep.mubr.f32.mxu0 0.0
    %v2172 = vand.u32 %v1256, 4294901760
    %2173 = vmatmul.mubr.f32.gmra.mrb[0].mxu0 %v2172
    %v2174 = vpop.f32.mrb[0].mxu0
    %v2175 = vadd.f32 %v2003, %v2174
    %v2176 = vpop.f32.mrb[0].mxu0
    %2177 = vmatprep.mubr.f32.mxu0 0.0
    %v2178 = vand.u32 %v1259, 4294901760
    %2179 = vmatmul.mubr.f32.gmra.mrb[0].mxu0 %v2178
    %v2180 = vpop.f32.mrb[0].mxu0
    %v2181 = vadd.f32 %v2011, %v2180
    %v2182 = vpop.f32.mrb[0].mxu0
    %2183 = vmatprep.mubr.f32.mxu0 0.0
    %v2184 = vand.u32 %v1262, 4294901760
    %2185 = vmatmul.mubr.f32.gmra.mrb[0].mxu0 %v2184
    %v2186 = vpop.f32.mrb[0].mxu0
    %v2187 = vadd.f32 %v2019, %v2186
    %v2188 = vpop.f32.mrb[0].mxu0
    %2189 = vmatprep.mubr.f32.mxu0 0.0
    %v2190 = vand.u32 %v1265, 4294901760
    %2191 = vmatmul.mubr.f32.gmra.mrb[0].mxu0 %v2190
    %v2192 = vpop.f32.mrb[0].mxu0
    %v2193 = vadd.f32 %v2027, %v2192
    %v2194 = vpop.f32.mrb[0].mxu0
    %2195 = vmatprep.mubr.f32.mxu0 0.0
    %v2196 = vand.u32 %v1268, 4294901760
    %2197 = vmatmul.mubr.f32.gmra.mrb[0].mxu0 %v2196
    %v2198 = vpop.f32.mrb[0].mxu0
    %v2199 = vadd.f32 %v2035, %v2198
    %v2200 = vpop.f32.mrb[0].mxu0
    %2201 = vdwg.mxu0
    %2202 = vmatprep.subr.mxu0 0.0
    %v2203 = vand.u32 %v1271, 4294901760
    %2204 = vmatpush1.msra.mxu0 %v2203
    %2205 = vmatprep.subr.mxu0 0.0
    %2206 = vmatpush1.msra.mxu0 0.0
    %2207 = vmatprep.subr.mxu0 0.0
    %2208 = vmatpush1.msra.mxu0 0.0
    %2209 = vmatprep.subr.mxu0 0.0
    %2210 = vmatpush1.msra.mxu0 0.0
    %2211 = vmatprep.subr.mxu0 0.0
    %2212 = vmatpush1.msra.mxu0 0.0
    %2213 = vmatprep.subr.mxu0 0.0
    %2214 = vmatpush1.msra.mxu0 0.0
    %2215 = vmatprep.subr.mxu0 0.0
    %2216 = vmatpush1.msra.mxu0 0.0
    %2217 = vmatprep.subr.mxu0 0.0
    %2218 = vmatpush1.msra.mxu0 0.0
    %2219 = vmatprep.subr.mxu0 0.0
    %2220 = vmatpush1.msra.mxu0 0.0
    %2221 = vmatprep.subr.mxu0 0.0
    %2222 = vmatpush1.msra.mxu0 0.0
    %2223 = vmatprep.subr.mxu0 0.0
    %2224 = vmatpush1.msra.mxu0 0.0
    %2225 = vmatprep.subr.mxu0 0.0
    %2226 = vmatpush1.msra.mxu0 0.0
    %2227 = vmatprep.subr.mxu0 0.0
    %2228 = vmatpush1.msra.mxu0 0.0
    %2229 = vmatprep.subr.mxu0 0.0
    %2230 = vmatpush1.msra.mxu0 0.0
    %2231 = vmatprep.subr.mxu0 0.0
    %2232 = vmatpush1.msra.mxu0 0.0
    %2233 = vmatprep.subr.mxu0 0.0
    %2234 = vmatpush1.msra.mxu0 0.0
    %2235 = vmatprep.subr.mxu0 0.0
    %2236 = vmatpush1.msra.mxu0 0.0
    %2237 = vmatprep.subr.mxu0 0.0
    %2238 = vmatpush1.msra.mxu0 0.0
    %2239 = vmatprep.subr.mxu0 0.0
    %2240 = vmatpush1.msra.mxu0 0.0
    %2241 = vmatprep.subr.mxu0 0.0
    %2242 = vmatpush1.msra.mxu0 0.0
    %2243 = vmatprep.subr.mxu0 0.0
    %2244 = vmatpush1.msra.mxu0 0.0
    %2245 = vmatprep.subr.mxu0 0.0
    %2246 = vmatpush1.msra.mxu0 0.0
    %2247 = vmatprep.subr.mxu0 0.0
    %2248 = vmatpush1.msra.mxu0 0.0
    %2249 = vmatprep.subr.mxu0 0.0
    %2250 = vmatpush1.msra.mxu0 0.0
    %2251 = vmatprep.subr.mxu0 0.0
    %2252 = vmatpush1.msra.mxu0 0.0
    %2253 = vmatprep.subr.mxu0 0.0
    %2254 = vmatpush1.msra.mxu0 0.0
    %2255 = vmatprep.subr.mxu0 0.0
    %2256 = vmatpush1.msra.mxu0 0.0
    %2257 = vmatprep.subr.mxu0 0.0
    %2258 = vmatpush1.msra.mxu0 0.0
    %2259 = vmatprep.subr.mxu0 0.0
    %2260 = vmatpush1.msra.mxu0 0.0
    %2261 = vmatprep.subr.mxu0 0.0
    %2262 = vmatpush1.msra.mxu0 0.0
    %2263 = vmatprep.subr.mxu0 0.0
    %2264 = vmatpush1.msra.mxu0 0.0
    %2265 = vmatprep.subr.mxu0 0.0
    %2266 = vmatpush1.msra.mxu0 0.0
    %2267 = vmatprep.mubr.f32.mxu0 0.0
    %v2268 = vand.u32 %v1223, 4294901760
    %2269 = vmatmul.mubr.f32.gmra.mrb[0].mxu0 %v2268
    %v2270 = vpop.f32.mrb[0].mxu0
    %v2271 = vadd.f32 %v2109, %v2270
    %v2272 = vpop.f32.mrb[0].mxu0
    %2273 = vmatprep.mubr.f32.mxu0 0.0
    %v2274 = vand.u32 %v1226, 4294901760
    %2275 = vmatmul.mubr.f32.gmra.mrb[0].mxu0 %v2274
    %v2276 = vpop.f32.mrb[0].mxu0
    %v2277 = vadd.f32 %v2115, %v2276
    %v2278 = vpop.f32.mrb[0].mxu0
    %2279 = vmatprep.mubr.f32.mxu0 0.0
    %v2280 = vand.u32 %v1229, 4294901760
    %2281 = vmatmul.mubr.f32.gmra.mrb[0].mxu0 %v2280
    %v2282 = vpop.f32.mrb[0].mxu0
    %v2283 = vadd.f32 %v2121, %v2282
    %v2284 = vpop.f32.mrb[0].mxu0
    %2285 = vmatprep.mubr.f32.mxu0 0.0
    %v2286 = vand.u32 %v1232, 4294901760
    %2287 = vmatmul.mubr.f32.gmra.mrb[0].mxu0 %v2286
    %v2288 = vpop.f32.mrb[0].mxu0
    %v2289 = vadd.f32 %v2127, %v2288
    %v2290 = vpop.f32.mrb[0].mxu0
    %2291 = vmatprep.mubr.f32.mxu0 0.0
    %v2292 = vand.u32 %v1235, 4294901760
    %2293 = vmatmul.mubr.f32.gmra.mrb[0].mxu0 %v2292
    %v2294 = vpop.f32.mrb[0].mxu0
    %v2295 = vadd.f32 %v2133, %v2294
    %v2296 = vpop.f32.mrb[0].mxu0
    %2297 = vmatprep.mubr.f32.mxu0 0.0
    %v2298 = vand.u32 %v1238, 4294901760
    %2299 = vmatmul.mubr.f32.gmra.mrb[0].mxu0 %v2298
    %v2300 = vpop.f32.mrb[0].mxu0
    %v2301 = vadd.f32 %v2139, %v2300
    %v2302 = vpop.f32.mrb[0].mxu0
    %2303 = vmatprep.mubr.f32.mxu0 0.0
    %v2304 = vand.u32 %v1241, 4294901760
    %2305 = vmatmul.mubr.f32.gmra.mrb[0].mxu0 %v2304
    %v2306 = vpop.f32.mrb[0].mxu0
    %v2307 = vadd.f32 %v2145, %v2306
    %v2308 = vpop.f32.mrb[0].mxu0
    %2309 = vmatprep.mubr.f32.mxu0 0.0
    %v2310 = vand.u32 %v1244, 4294901760
    %2311 = vmatmul.mubr.f32.gmra.mrb[0].mxu0 %v2310
    %v2312 = vpop.f32.mrb[0].mxu0
    %v2313 = vadd.f32 %v2151, %v2312
    %v2314 = vpop.f32.mrb[0].mxu0
    %2315 = vmatprep.mubr.f32.mxu0 0.0
    %v2316 = vand.u32 %v1247, 4294901760
    %2317 = vmatmul.mubr.f32.gmra.mrb[0].mxu0 %v2316
    %v2318 = vpop.f32.mrb[0].mxu0
    %v2319 = vadd.f32 %v2157, %v2318
    %v2320 = vpop.f32.mrb[0].mxu0
    %2321 = vmatprep.mubr.f32.mxu0 0.0
    %v2322 = vand.u32 %v1250, 4294901760
    %2323 = vmatmul.mubr.f32.gmra.mrb[0].mxu0 %v2322
    %v2324 = vpop.f32.mrb[0].mxu0
    %v2325 = vadd.f32 %v2163, %v2324
    %v2326 = vpop.f32.mrb[0].mxu0
    %2327 = vmatprep.mubr.f32.mxu0 0.0
    %v2328 = vand.u32 %v1253, 4294901760
    %2329 = vmatmul.mubr.f32.gmra.mrb[0].mxu0 %v2328
    %v2330 = vpop.f32.mrb[0].mxu0
    %v2331 = vadd.f32 %v2169, %v2330
    %v2332 = vpop.f32.mrb[0].mxu0
    %2333 = vmatprep.mubr.f32.mxu0 0.0
    %v2334 = vand.u32 %v1256, 4294901760
    %2335 = vmatmul.mubr.f32.gmra.mrb[0].mxu0 %v2334
    %v2336 = vpop.f32.mrb[0].mxu0
    %v2337 = vadd.f32 %v2175, %v2336
    %v2338 = vpop.f32.mrb[0].mxu0
    %2339 = vmatprep.mubr.f32.mxu0 0.0
    %v2340 = vand.u32 %v1259, 4294901760
    %2341 = vmatmul.mubr.f32.gmra.mrb[0].mxu0 %v2340
    %v2342 = vpop.f32.mrb[0].mxu0
    %v2343 = vadd.f32 %v2181, %v2342
    %v2344 = vpop.f32.mrb[0].mxu0
    %2345 = vmatprep.mubr.f32.mxu0 0.0
    %v2346 = vand.u32 %v1262, 4294901760
    %2347 = vmatmul.mubr.f32.gmra.mrb[0].mxu0 %v2346
    %v2348 = vpop.f32.mrb[0].mxu0
    %v2349 = vadd.f32 %v2187, %v2348
    %v2350 = vpop.f32.mrb[0].mxu0
    %2351 = vmatprep.mubr.f32.mxu0 0.0
    %v2352 = vand.u32 %v1265, 4294901760
    %2353 = vmatmul.mubr.f32.gmra.mrb[0].mxu0 %v2352
    %v2354 = vpop.f32.mrb[0].mxu0
    %v2355 = vadd.f32 %v2193, %v2354
    %v2356 = vpop.f32.mrb[0].mxu0
    %2357 = vmatprep.mubr.f32.mxu0 0.0
    %v2358 = vand.u32 %v1268, 4294901760
    %2359 = vmatmul.mubr.f32.gmra.mrb[0].mxu0 %v2358
    %v2360 = vpop.f32.mrb[0].mxu0
    %v2361 = vadd.f32 %v2199, %v2360
    %v2362 = vpop.f32.mrb[0].mxu0
    %2363 = vdwg.mxu0
    %v2364 = vld [vmem:[%s4] sm:$0x1]
    %v2366 = vlaneseq
    %v2367 = vshrl.u32 %v2366, 7
    %v2368 = vsub.s32 0, %v2367
    %v2369 = vrot.slane %v2364, %v2368
    %v2371 = vadd.f32 %v2271, %v2369
    %v2372 = vadd.f32 %v2277, %v2369
    %v2373 = vadd.f32 %v2283, %v2369
    %v2374 = vadd.f32 %v2289, %v2369
    %v2375 = vadd.f32 %v2295, %v2369
    %v2376 = vadd.f32 %v2301, %v2369
    %v2377 = vadd.f32 %v2307, %v2369
    %v2378 = vadd.f32 %v2313, %v2369
    %v2379 = vadd.f32 %v2319, %v2369
    %v2380 = vadd.f32 %v2325, %v2369
    %v2381 = vadd.f32 %v2331, %v2369
    %v2382 = vadd.f32 %v2337, %v2369
    %v2383 = vadd.f32 %v2343, %v2369
    %v2384 = vadd.f32 %v2349, %v2369
    %v2385 = vadd.f32 %v2355, %v2369
    %v2386 = vadd.f32 %v2361, %v2369
    %2387 = vst [vmem:[#allocation2] sm:$0xff] %v2371
    %2388 = vst [vmem:[#allocation2 + $0x8] sm:$0xff] %v2372
    %2389 = vst [vmem:[#allocation2 + $0x10] sm:$0xff] %v2373
    %2390 = vst [vmem:[#allocation2 + $0x18] sm:$0xff] %v2374
    %2391 = vst [vmem:[#allocation2 + $0x20] sm:$0xff] %v2375
    %2392 = vst [vmem:[#allocation2 + $0x28] sm:$0xff] %v2376
    %2393 = vst [vmem:[#allocation2 + $0x30] sm:$0xff] %v2377
    %2394 = vst [vmem:[#allocation2 + $0x38] sm:$0xff] %v2378
    %2395 = vst [vmem:[#allocation2 + $0x40] sm:$0xff] %v2379
    %2396 = vst [vmem:[#allocation2 + $0x48] sm:$0xff] %v2380
    %2397 = vst [vmem:[#allocation2 + $0x50] sm:$0xff] %v2381
    %2398 = vst [vmem:[#allocation2 + $0x58] sm:$0xff] %v2382
    %2399 = vst [vmem:[#allocation2 + $0x60] sm:$0xff] %v2383
    %2400 = vst [vmem:[#allocation2 + $0x68] sm:$0xff] %v2384
    %2401 = vst [vmem:[#allocation2 + $0x70] sm:$0xff] %v2385
    %2402 = vst [vmem:[#allocation2 + $0x78] sm:$0xff] %v2386
    // Predicated region
    $region22: #{tpu_custom_call.1} parent=1 // pred_check
      _
    $region23: #{tpu_custom_call.1} parent=1 // pred_check_branch
      %2404 = sbr.rel (0) target = $region25
    $region24: #{tpu_custom_call.1} parent=1 // pred_region
      %s2406 = ssub.s32 2048, 2048
      %2407 = vsyncadd [#allocation3], %s2406
      %s2408 = sshll.u32 [#allocation2], 4
      %s2409 = int_to_ptr.vmem [resolvable:$true] %s2408
      %2414 = dma.vmem_to_hbm [thread:$0]  %s2409, 2048, %s5, [#allocation3], 128, 128, 8
    $region25: #{tpu_custom_call.1} parent=1 // pred_fallthru
      _
    // Predicated region
    $region26: #{tpu_custom_call.1} parent=1 // pred_check
      _
    $region27: #{tpu_custom_call.1} parent=1 // pred_check_branch
      %2416 = sbr.rel (0) target = $region29
    $region28: #{tpu_custom_call.1} parent=1 // pred_region
      %2417 = dma.done [#allocation3], 2048
    $region29: #{tpu_custom_call.1} parent=1 // pred_fallthru
      _
    %2418 = vsyncpa [#allocation3], 1

</llo_original>
